<compile_context>
chip_gen: v7x
topology: tpu7x:2x2x1
jax: 0.10.0
libtpu: 0.0.40
codegen_flags: <defaults>
</compile_context>

<pallas_src>
import functools

import jax
import jax.numpy as jnp
from jax.experimental import pallas as pl
from jax.experimental.pallas import tpu as pltpu

LANE = 128  # lane width == output-channel tile


def _round_up(x, m):
    return (x + m - 1) // m * m


# ----------------------------- Pallas kernel --------------------------------

def _sepconv_kernel(x_ref, dw_ref, pw_ref, o_ref, dw_scr, *, k, Ho, Wo):
    """Fused depthwise(k x k, stride 1) + pointwise(1x1) conv.

    Grid = (batch, Cout-tiles).  One grid step = one image x one 128-wide
    output-channel tile.  The depthwise result for the image is computed only
    at the first Cout tile and cached in `dw_scr` (VMEM, bf16) for reuse.

      x_ref : (1, Ho+k-1, Wo+k-1, Cinp)  f32  spatially pre-padded input
      dw_ref: (k*k, Cinp)                f32  depthwise taps, tap = kh*k + kw
      pw_ref: (Cinp, LANE)               bf16 pointwise weight tile
      o_ref : (1, Ho, Wo, LANE)          f32
      dw_scr: (Ho*Wo, Cinp)              bf16 VMEM scratch (depthwise output)
    """
    @pl.when(pl.program_id(1) == 0)
    def _compute_depthwise():
        w = dw_ref[...]
        # Unrolled tap accumulation in f32 on the VPU; result never touches HBM.
        acc = x_ref[0, 0:Ho, 0:Wo, :] * w[0][None, None, :]
        for tap in range(1, k * k):
            kh, kw = divmod(tap, k)
            acc = acc + x_ref[0, kh:kh + Ho, kw:kw + Wo, :] * w[tap][None, None, :]
        dw_scr[...] = acc.astype(jnp.bfloat16).reshape(Ho * Wo, acc.shape[-1])

    # Pointwise: bf16 operands on the MXU, f32 accumulation.
    res = jnp.dot(dw_scr[...], pw_ref[...], preferred_element_type=jnp.float32)
    o_ref[0] = res.reshape(Ho, Wo, -1)


# ------------------------------ wrappers -------------------------------------

def prepare_separable_params(dw_weight, pw_weight):
    """Pack PyTorch-layout weights ONCE (lane padding + dtype casts).

      dw_weight: (Cin, 1, k, k)    depthwise conv weight (groups = Cin)
      pw_weight: (Cout, Cin, 1, 1) pointwise conv weight
    Returns dict of device arrays plus static metadata (python ints).
    """
    cin = int(dw_weight.shape[0])
    k = int(dw_weight.shape[-1])
    cout = int(pw_weight.shape[0])
    cinp = _round_up(cin, LANE)
    coutp = _round_up(cout, LANE)

    # (Cin,1,k,k) -> (k,k,Cin) -> (k*k, Cin); tap index = kh*k + kw
    dw_taps = jnp.transpose(dw_weight[:, 0, :, :], (1, 2, 0)).reshape(k * k, cin)
    dw_taps = jnp.pad(dw_taps.astype(jnp.float32), ((0, 0), (0, cinp - cin)))

    # (Cout,Cin,1,1) -> (Cin, Cout), pad to (Cinp, Coutp), cast to bf16
    pw = jnp.transpose(pw_weight[:, :, 0, 0], (1, 0)).astype(jnp.float32)
    pw = jnp.pad(pw, ((0, cinp - cin), (0, coutp - cout))).astype(jnp.bfloat16)

    return {"dw": dw_taps, "pw": pw, "k": k, "cin": cin, "cout": cout}


def _separable_conv2d_impl(x_nchw, dw_taps, pw_mat, *, k, cin, cout, padding):
    """SeparableConv2d.forward: stride=1, dilation=1, bias=False. NCHW in/out."""
    # TODO(synk): stride>1 / dilation>1 / bias=True variants not implemented
    # (the module's defaults are stride=1, dilation=1, bias=False).
    cinp = dw_taps.shape[1]
    coutp = pw_mat.shape[1]
    B, C, H, W = x_nchw.shape
    assert C == cin
    Ho = H + 2 * padding - (k - 1)
    Wo = W + 2 * padding - (k - 1)
    assert Ho > 0 and Wo > 0

    # NCHW -> NHWC; one pad op covers the spatial halo + channel lane padding.
    x = jnp.transpose(x_nchw.astype(jnp.float32), (0, 2, 3, 1))
    x = jnp.pad(x, ((0, 0), (padding, padding), (padding, padding),
                    (0, cinp - cin)))
    Hp, Wp = H + 2 * padding, W + 2 * padding

    kern = functools.partial(_sepconv_kernel, k=k, Ho=Ho, Wo=Wo)
    out = pl.pallas_call(
        kern,
        out_shape=jax.ShapeDtypeStruct((B, Ho, Wo, coutp), jnp.float32),
        grid_spec=pltpu.PrefetchScalarGridSpec(
            num_scalar_prefetch=0,
            grid=(B, coutp // LANE),
            in_specs=[
                # x block index is constant across the co axis -> no re-DMA.
                pl.BlockSpec((1, Hp, Wp, cinp), lambda b, co: (b, 0, 0, 0)),
                pl.BlockSpec((k * k, cinp), lambda b, co: (0, 0)),
                pl.BlockSpec((cinp, LANE), lambda b, co: (0, co)),
            ],
            out_specs=pl.BlockSpec((1, Ho, Wo, LANE),
                                   lambda b, co: (b, 0, 0, co)),
            scratch_shapes=[pltpu.VMEM((Ho * Wo, cinp), jnp.bfloat16)],
        ),
        compiler_params=pltpu.CompilerParams(
            # co axis carries the depthwise scratch -> must stay "arbitrary".
            dimension_semantics=("parallel", "arbitrary")),
    )(x, dw_taps, pw_mat)

    out = out[:, :, :, :cout]
    return jnp.transpose(out, (0, 3, 1, 2))  # NHWC -> NCHW


separable_conv2d = jax.jit(
    _separable_conv2d_impl, static_argnames=("k", "cin", "cout", "padding"))


# --------------------------------- main --------------------------------------

if __name__ == "__main__":
    key = jax.random.PRNGKey(0)
    k0, k1, k2 = jax.random.split(key, 3)

    # SeparableConv2d(32, 64, kernel_size=3, padding=1, bias=False)
    B, Cin, H, W = 2, 32, 16, 16
    Cout, K, PAD = 64, 3, 1

    x = jax.random.normal(k0, (B, Cin, H, W), jnp.float32)
    dw_w = 0.05 * jax.random.normal(k1, (Cin, 1, K, K), jnp.float32)
    pw_w = 0.05 * jax.random.normal(k2, (Cout, Cin, 1, 1), jnp.float32)

    params = prepare_separable_params(dw_w, pw_w)
    out = separable_conv2d(x, params["dw"], params["pw"],
                           k=params["k"], cin=params["cin"],
                           cout=params["cout"], padding=PAD)
    out = jax.block_until_ready(out)
    assert out.shape == (B, Cout, H, W), out.shape
    assert bool(jnp.all(jnp.isfinite(out)))

    # Reference: depthwise then pointwise via lax.conv (f32), PyTorch semantics.
    ref_dw = jax.lax.conv_general_dilated(
        x, dw_w, window_strides=(1, 1), padding=[(PAD, PAD), (PAD, PAD)],
        dimension_numbers=("NCHW", "OIHW", "NCHW"), feature_group_count=Cin)
    ref = jax.lax.conv_general_dilated(
        ref_dw, pw_w, window_strides=(1, 1), padding="VALID",
        dimension_numbers=("NCHW", "OIHW", "NCHW"))
    assert jnp.allclose(out, ref, atol=1e-2, rtol=1e-2), (
        "max abs err = %f" % float(jnp.max(jnp.abs(out - ref))))

    print("KERNEL_OK")
</pallas_src>

<mosaic_0001>
module attributes {stable_mosaic.version = 11 : i64} {
  func.func @_sepconv_kernel(%arg0: i32, %arg1: i32, %arg2: memref<1x18x18x128xf32, #tpu.memory_space<vmem>>, %arg3: memref<9x128xf32, #tpu.memory_space<vmem>>, %arg4: memref<128x128xbf16, #tpu.memory_space<vmem>>, %arg5: memref<1x16x16x128xf32, #tpu.memory_space<vmem>>, %arg6: memref<256x128xbf16, #tpu.memory_space<vmem>>) attributes {dimension_semantics = [#tpu.dimension_semantics<parallel>, #tpu.dimension_semantics<arbitrary>], iteration_bounds = array<i64: 2, 1>, scalar_prefetch = 0 : i64, scratch_operands = 1 : i64, tpu.core_type = #tpu.core_type<tc>, window_params = [{transform_indices = @transform_0, window_bounds = array<i64: 1, 18, 18, 128>}, {pipeline_mode = #tpu.pipeline_mode<synchronous>, transform_indices = @transform_1, window_bounds = array<i64: 9, 128>}, {transform_indices = @transform_2, window_bounds = array<i64: 128, 128>}, {transform_indices = @transform_3, window_bounds = array<i64: 1, 16, 16, 128>}]} {
    %c0_i32 = arith.constant 0 : i32
    %0 = arith.cmpi eq, %arg1, %c0_i32 : i32
    %1 = arith.extui %0 : i1 to i32
    %c0_i32_0 = arith.constant 0 : i32
    %2 = arith.cmpi ne, %1, %c0_i32_0 : i32
    scf.if %2 {
      %c0_8 = arith.constant 0 : index
      %c0_9 = arith.constant 0 : index
      %10 = vector.load %arg3[%c0_8, %c0_9] : memref<9x128xf32, #tpu.memory_space<vmem>>, vector<9x128xf32>
      %c0_10 = arith.constant 0 : index
      %c0_11 = arith.constant 0 : index
      %c0_12 = arith.constant 0 : index
      %c0_13 = arith.constant 0 : index
      %11 = vector.load %arg2[%c0_10, %c0_11, %c0_12, %c0_13] : memref<1x18x18x128xf32, #tpu.memory_space<vmem>>, vector<1x16x16x128xf32>
      %12 = vector.shape_cast %11 : vector<1x16x16x128xf32> to vector<16x16x128xf32>
      %13 = vector.extract_strided_slice %10 {offsets = [0, 0], sizes = [1, 128], strides = [1, 1]} : vector<9x128xf32> to vector<1x128xf32>
      %14 = vector.shape_cast %13 : vector<1x128xf32> to vector<128xf32>
      %15 = vector.shape_cast %14 : vector<128xf32> to vector<1x1x128xf32>
      %16 = vector.broadcast %15 : vector<1x1x128xf32> to vector<16x16x128xf32>
      %17 = arith.mulf %12, %16 : vector<16x16x128xf32>
      %c0_14 = arith.constant 0 : index
      %c0_15 = arith.constant 0 : index
      %c1 = arith.constant 1 : index
      %c0_16 = arith.constant 0 : index
      %18 = vector.load %arg2[%c0_14, %c0_15, %c1, %c0_16] : memref<1x18x18x128xf32, #tpu.memory_space<vmem>>, vector<1x16x16x128xf32>
      %19 = vector.shape_cast %18 : vector<1x16x16x128xf32> to vector<16x16x128xf32>
      %20 = vector.extract_strided_slice %10 {offsets = [1, 0], sizes = [1, 128], strides = [1, 1]} : vector<9x128xf32> to vector<1x128xf32>
      %21 = vector.shape_cast %20 : vector<1x128xf32> to vector<128xf32>
      %22 = vector.shape_cast %21 : vector<128xf32> to vector<1x1x128xf32>
      %23 = vector.broadcast %22 : vector<1x1x128xf32> to vector<16x16x128xf32>
      %24 = arith.mulf %19, %23 : vector<16x16x128xf32>
      %25 = arith.addf %17, %24 : vector<16x16x128xf32>
      %c0_17 = arith.constant 0 : index
      %c0_18 = arith.constant 0 : index
      %c2 = arith.constant 2 : index
      %c0_19 = arith.constant 0 : index
      %26 = vector.load %arg2[%c0_17, %c0_18, %c2, %c0_19] : memref<1x18x18x128xf32, #tpu.memory_space<vmem>>, vector<1x16x16x128xf32>
      %27 = vector.shape_cast %26 : vector<1x16x16x128xf32> to vector<16x16x128xf32>
      %28 = vector.extract_strided_slice %10 {offsets = [2, 0], sizes = [1, 128], strides = [1, 1]} : vector<9x128xf32> to vector<1x128xf32>
      %29 = vector.shape_cast %28 : vector<1x128xf32> to vector<128xf32>
      %30 = vector.shape_cast %29 : vector<128xf32> to vector<1x1x128xf32>
      %31 = vector.broadcast %30 : vector<1x1x128xf32> to vector<16x16x128xf32>
      %32 = arith.mulf %27, %31 : vector<16x16x128xf32>
      %33 = arith.addf %25, %32 : vector<16x16x128xf32>
      %c0_20 = arith.constant 0 : index
      %c1_21 = arith.constant 1 : index
      %c0_22 = arith.constant 0 : index
      %c0_23 = arith.constant 0 : index
      %34 = vector.load %arg2[%c0_20, %c1_21, %c0_22, %c0_23] : memref<1x18x18x128xf32, #tpu.memory_space<vmem>>, vector<1x16x16x128xf32>
      %35 = vector.shape_cast %34 : vector<1x16x16x128xf32> to vector<16x16x128xf32>
      %36 = vector.extract_strided_slice %10 {offsets = [3, 0], sizes = [1, 128], strides = [1, 1]} : vector<9x128xf32> to vector<1x128xf32>
      %37 = vector.shape_cast %36 : vector<1x128xf32> to vector<128xf32>
      %38 = vector.shape_cast %37 : vector<128xf32> to vector<1x1x128xf32>
      %39 = vector.broadcast %38 : vector<1x1x128xf32> to vector<16x16x128xf32>
      %40 = arith.mulf %35, %39 : vector<16x16x128xf32>
      %41 = arith.addf %33, %40 : vector<16x16x128xf32>
      %c0_24 = arith.constant 0 : index
      %c1_25 = arith.constant 1 : index
      %c1_26 = arith.constant 1 : index
      %c0_27 = arith.constant 0 : index
      %42 = vector.load %arg2[%c0_24, %c1_25, %c1_26, %c0_27] : memref<1x18x18x128xf32, #tpu.memory_space<vmem>>, vector<1x16x16x128xf32>
      %43 = vector.shape_cast %42 : vector<1x16x16x128xf32> to vector<16x16x128xf32>
      %44 = vector.extract_strided_slice %10 {offsets = [4, 0], sizes = [1, 128], strides = [1, 1]} : vector<9x128xf32> to vector<1x128xf32>
      %45 = vector.shape_cast %44 : vector<1x128xf32> to vector<128xf32>
      %46 = vector.shape_cast %45 : vector<128xf32> to vector<1x1x128xf32>
      %47 = vector.broadcast %46 : vector<1x1x128xf32> to vector<16x16x128xf32>
      %48 = arith.mulf %43, %47 : vector<16x16x128xf32>
      %49 = arith.addf %41, %48 : vector<16x16x128xf32>
      %c0_28 = arith.constant 0 : index
      %c1_29 = arith.constant 1 : index
      %c2_30 = arith.constant 2 : index
      %c0_31 = arith.constant 0 : index
      %50 = vector.load %arg2[%c0_28, %c1_29, %c2_30, %c0_31] : memref<1x18x18x128xf32, #tpu.memory_space<vmem>>, vector<1x16x16x128xf32>
      %51 = vector.shape_cast %50 : vector<1x16x16x128xf32> to vector<16x16x128xf32>
      %52 = vector.extract_strided_slice %10 {offsets = [5, 0], sizes = [1, 128], strides = [1, 1]} : vector<9x128xf32> to vector<1x128xf32>
      %53 = vector.shape_cast %52 : vector<1x128xf32> to vector<128xf32>
      %54 = vector.shape_cast %53 : vector<128xf32> to vector<1x1x128xf32>
      %55 = vector.broadcast %54 : vector<1x1x128xf32> to vector<16x16x128xf32>
      %56 = arith.mulf %51, %55 : vector<16x16x128xf32>
      %57 = arith.addf %49, %56 : vector<16x16x128xf32>
      %c0_32 = arith.constant 0 : index
      %c2_33 = arith.constant 2 : index
      %c0_34 = arith.constant 0 : index
      %c0_35 = arith.constant 0 : index
      %58 = vector.load %arg2[%c0_32, %c2_33, %c0_34, %c0_35] : memref<1x18x18x128xf32, #tpu.memory_space<vmem>>, vector<1x16x16x128xf32>
      %59 = vector.shape_cast %58 : vector<1x16x16x128xf32> to vector<16x16x128xf32>
      %60 = vector.extract_strided_slice %10 {offsets = [6, 0], sizes = [1, 128], strides = [1, 1]} : vector<9x128xf32> to vector<1x128xf32>
      %61 = vector.shape_cast %60 : vector<1x128xf32> to vector<128xf32>
      %62 = vector.shape_cast %61 : vector<128xf32> to vector<1x1x128xf32>
      %63 = vector.broadcast %62 : vector<1x1x128xf32> to vector<16x16x128xf32>
      %64 = arith.mulf %59, %63 : vector<16x16x128xf32>
      %65 = arith.addf %57, %64 : vector<16x16x128xf32>
      %c0_36 = arith.constant 0 : index
      %c2_37 = arith.constant 2 : index
      %c1_38 = arith.constant 1 : index
      %c0_39 = arith.constant 0 : index
      %66 = vector.load %arg2[%c0_36, %c2_37, %c1_38, %c0_39] : memref<1x18x18x128xf32, #tpu.memory_space<vmem>>, vector<1x16x16x128xf32>
      %67 = vector.shape_cast %66 : vector<1x16x16x128xf32> to vector<16x16x128xf32>
      %68 = vector.extract_strided_slice %10 {offsets = [7, 0], sizes = [1, 128], strides = [1, 1]} : vector<9x128xf32> to vector<1x128xf32>
      %69 = vector.shape_cast %68 : vector<1x128xf32> to vector<128xf32>
      %70 = vector.shape_cast %69 : vector<128xf32> to vector<1x1x128xf32>
      %71 = vector.broadcast %70 : vector<1x1x128xf32> to vector<16x16x128xf32>
      %72 = arith.mulf %67, %71 : vector<16x16x128xf32>
      %73 = arith.addf %65, %72 : vector<16x16x128xf32>
      %c0_40 = arith.constant 0 : index
      %c2_41 = arith.constant 2 : index
      %c2_42 = arith.constant 2 : index
      %c0_43 = arith.constant 0 : index
      %74 = vector.load %arg2[%c0_40, %c2_41, %c2_42, %c0_43] : memref<1x18x18x128xf32, #tpu.memory_space<vmem>>, vector<1x16x16x128xf32>
      %75 = vector.shape_cast %74 : vector<1x16x16x128xf32> to vector<16x16x128xf32>
      %76 = vector.extract_strided_slice %10 {offsets = [8, 0], sizes = [1, 128], strides = [1, 1]} : vector<9x128xf32> to vector<1x128xf32>
      %77 = vector.shape_cast %76 : vector<1x128xf32> to vector<128xf32>
      %78 = vector.shape_cast %77 : vector<128xf32> to vector<1x1x128xf32>
      %79 = vector.broadcast %78 : vector<1x1x128xf32> to vector<16x16x128xf32>
      %80 = arith.mulf %75, %79 : vector<16x16x128xf32>
      %81 = arith.addf %73, %80 : vector<16x16x128xf32>
      %82 = arith.truncf %81 : vector<16x16x128xf32> to vector<16x16x128xbf16>
      %83 = vector.shape_cast %82 : vector<16x16x128xbf16> to vector<256x128xbf16>
      %c0_44 = arith.constant 0 : index
      %c0_45 = arith.constant 0 : index
      %84 = vector.load %arg6[%c0_44, %c0_45] : memref<256x128xbf16, #tpu.memory_space<vmem>>, vector<256x128xbf16>
      tpu.vector_store %arg6[%c0_44, %c0_45], %83 {strides = array<i32>} : memref<256x128xbf16, #tpu.memory_space<vmem>>, vector<256x128xbf16>,
    } else {
    }
    %c0 = arith.constant 0 : index
    %c0_1 = arith.constant 0 : index
    %3 = vector.load %arg6[%c0, %c0_1] : memref<256x128xbf16, #tpu.memory_space<vmem>>, vector<256x128xbf16>
    %c0_2 = arith.constant 0 : index
    %c0_3 = arith.constant 0 : index
    %4 = vector.load %arg4[%c0_2, %c0_3] : memref<128x128xbf16, #tpu.memory_space<vmem>>, vector<128x128xbf16>
    %cst = arith.constant dense<0.000000e+00> : vector<256x128xf32>
    %5 = tpu.matmul %3, %4, %cst {dimension_numbers = #tpu.dot_dimension_numbers<[1], [0], [0], [1], [0, 0, 1, 1], [], []>} : vector<256x128xbf16>, vector<128x128xbf16>, vector<256x128xf32> -> vector<256x128xf32>
    %6 = vector.shape_cast %5 : vector<256x128xf32> to vector<16x16x128xf32>
    %c0_4 = arith.constant 0 : index
    %c0_5 = arith.constant 0 : index
    %c0_6 = arith.constant 0 : index
    %c0_7 = arith.constant 0 : index
    %7 = vector.load %arg5[%c0_4, %c0_5, %c0_6, %c0_7] : memref<1x16x16x128xf32, #tpu.memory_space<vmem>>, vector<1x16x16x128xf32>
    %8 = vector.shape_cast %7 : vector<1x16x16x128xf32> to vector<16x16x128xf32>
    %9 = vector.shape_cast %6 : vector<16x16x128xf32> to vector<1x16x16x128xf32>
    tpu.vector_store %arg5[%c0_4, %c0_5, %c0_6, %c0_7], %9 {strides = array<i32>} : memref<1x16x16x128xf32, #tpu.memory_space<vmem>>, vector<1x16x16x128xf32>,
    return
  }
  func.func @transform_0(%arg0: i32, %arg1: i32) -> (i32, i32, i32, i32) {
    %c0_i32 = arith.constant 0 : i32
    %c0_i32_0 = arith.constant 0 : i32
    %c0_i32_1 = arith.constant 0 : i32
    %c0_i32_2 = arith.constant 0 : i32
    return %arg0, %c0_i32, %c0_i32_0, %c0_i32_1 : i32, i32, i32, i32
  }
  func.func @transform_1(%arg0: i32, %arg1: i32) -> (i32, i32) {
    %c0_i32 = arith.constant 0 : i32
    %c0_i32_0 = arith.constant 0 : i32
    %c0_i32_1 = arith.constant 0 : i32
    return %c0_i32, %c0_i32_0 : i32, i32
  }
  func.func @transform_2(%arg0: i32, %arg1: i32) -> (i32, i32) {
    %c0_i32 = arith.constant 0 : i32
    %c0_i32_0 = arith.constant 0 : i32
    return %c0_i32, %arg1 : i32, i32
  }
  func.func @transform_3(%arg0: i32, %arg1: i32) -> (i32, i32, i32, i32) {
    %c0_i32 = arith.constant 0 : i32
    %c0_i32_0 = arith.constant 0 : i32
    %c0_i32_1 = arith.constant 0 : i32
    return %arg0, %c0_i32, %c0_i32_0, %arg1 : i32, i32, i32, i32
  }
}

</mosaic_0001>

<llo_original>
// kernel: _separable_conv2d_impl.1
$region0: #{_separable_conv2d_impl.1}
  #allocation0 [shape = 'u32[]', space=smem, size = 0x4, offset = 0x4, fixed_abs, tag = 'smem constant byte address 0x4 - core index']
  #allocation1 [shape = 'u32[144,128]{1,0:T(1,128)}', space=vmem, size = 0x12000, scoped, tag = 'internal scratch']
  #allocation2 [shape = 'bf16[256,128]{1,0:T(16,128)(2,1)}', space=vmem, size = 0x10000, scoped, tag = 'scratch operand']
  %s0 = inlined_call_operand.vmem [shape: f32[2,18,18,128], index: 0, kind: input, shape index: {}]
  %s1 = inlined_call_operand.vmem [shape: f32[9,128], index: 1, kind: input, shape index: {}]
  %s2 = inlined_call_operand.vmem [shape: bf16[128,128], index: 2, kind: input, shape index: {}]
  %s3 = inlined_call_operand.vmem [shape: f32[2,16,16,128], index: 3, kind: output, shape index: {}]
  %s4 = sld [smem:[#allocation0]]
  $region49: #{_separable_conv2d_impl.1} parent=0
    _
  %s6 = ssub.s32 1, %s4
  %s7 = scalar_select 0, %s6, %s4
  loop: start=0, step=1, limit=4
  $region2: #{_separable_conv2d_impl.1} parent=0 // loop_pre_header
    _
  $region3: #{_separable_conv2d_impl.1} parent=0 // loop_header
    %s9 = sphi 0, %s13
    %p10 = scmp.ge.s32.totalorder %s9, 4
    %s16 = sphi 0, %s28
    %s17 = sphi 0, %s24
    %s18 = sphi 0, %s16
    %s19 = sphi 0, %s17
    %s20 = sphi 0, %s18
    %s21 = sphi 0, %s19
    %s31 = sphi 0, %s33
    %s34 = sphi 0, %s31
    %s35 = sphi 0, %s34
    %s51 = sphi 0, %s35
    %s55 = sphi 0, %s55
    %s57 = sphi 0, %s55
    %s58 = sphi 0, %s57
    %s72 = sphi 0, %s58
    %s78 = sphi 0, %s80
    %s81 = sphi 0, %s78
    %s82 = sphi 0, %s81
    %s98 = sphi 0, %s82
    %s106 = sphi 0, %s108
    %s109 = sphi 0, %s106
    %s110 = sphi 0, %s109
    %s126 = sphi 0, %s110
  $region4: #{_separable_conv2d_impl.1} parent=0 // loop_header_branch
    %12 = sbr.rel (%p10) target = $region8
  $region5: #{_separable_conv2d_impl.1} parent=0 // loop_body
    %s14 = ssub.s32 %s9, 1
    %s15 = ssub.s32 %s9, 2
    %s22 = sadd.s32 1, %s17
    %p23 = scmp.ge.s32.totalorder %s22, 1
    %s24 = scalar_select %p23, 0, %s22
    %s25 = sadd.s32 1, %s16
    %s26 = scalar_select %p23, %s25, %s16
    %p27 = scmp.ge.s32.totalorder %s26, 2
    %s28 = scalar_select %p27, 0, %s26
    %s29 = ssub.s32 %s16, %s28
    %p30 = scmp.eq.s32.totalorder %s29, 0
    %s32 = sadd.s32 %s31, 1
    %s33 = scalar_select %p30, %s31, %s32
    %p36 = pneg %p30
    %p37 = scmp.eq.s32.totalorder %s9, 1
    %p38 = por %p36, %p37
    %p39 = scmp.ne.s32.totalorder %s31, %s34
    %p40 = scmp.eq.s32.totalorder %s9, 0
    %p41 = por %p39, %p40
    %p42 = scmp.ne.s32.totalorder %s31, %s34
    %p43 = scmp.eq.s32.totalorder %s14, 1
    %p44 = por %p42, %p43
    %p45 = scmp.ne.s32.totalorder %s34, %s35
    %p46 = scmp.eq.s32.totalorder %s14, 0
    %p47 = por %p45, %p46
    %p48 = scmp.ne.s32.totalorder %s34, %s35
    %p49 = scmp.eq.s32.totalorder %s15, 1
    %p50 = por %p48, %p49
    %p52 = scmp.ne.s32.totalorder %s35, %s51
    %p53 = scmp.eq.s32.totalorder %s15, 0
    %p54 = por %p52, %p53
    %s56 = sadd.s32 %s55, 1
    %p59 = scmp.eq.s32.totalorder %s9, 1
    %p60 = scmp.ne.s32.totalorder %s55, %s57
    %p61 = scmp.eq.s32.totalorder %s9, 0
    %p62 = por %p60, %p61
    %p63 = scmp.ne.s32.totalorder %s55, %s57
    %p64 = scmp.eq.s32.totalorder %s14, 1
    %p65 = por %p63, %p64
    %p66 = scmp.ne.s32.totalorder %s57, %s58
    %p67 = scmp.eq.s32.totalorder %s14, 0
    %p68 = por %p66, %p67
    %p69 = scmp.ne.s32.totalorder %s57, %s58
    %p70 = scmp.eq.s32.totalorder %s15, 1
    %p71 = por %p69, %p70
    %p73 = scmp.ne.s32.totalorder %s58, %s72
    %p74 = scmp.eq.s32.totalorder %s15, 0
    %p75 = por %p73, %p74
    %s76 = ssub.s32 %s17, %s24
    %p77 = scmp.eq.s32.totalorder %s76, 0
    %s79 = sadd.s32 %s78, 1
    %s80 = scalar_select %p77, %s78, %s79
    %p83 = pneg %p77
    %p84 = scmp.eq.s32.totalorder %s9, 1
    %p85 = por %p83, %p84
    %p86 = scmp.ne.s32.totalorder %s78, %s81
    %p87 = scmp.eq.s32.totalorder %s9, 0
    %p88 = por %p86, %p87
    %p89 = scmp.ne.s32.totalorder %s78, %s81
    %p90 = scmp.eq.s32.totalorder %s14, 1
    %p91 = por %p89, %p90
    %p92 = scmp.ne.s32.totalorder %s81, %s82
    %p93 = scmp.eq.s32.totalorder %s14, 0
    %p94 = por %p92, %p93
    %p95 = scmp.ne.s32.totalorder %s81, %s82
    %p96 = scmp.eq.s32.totalorder %s15, 1
    %p97 = por %p95, %p96
    %p99 = scmp.ne.s32.totalorder %s82, %s98
    %p100 = scmp.eq.s32.totalorder %s15, 0
    %p101 = por %p99, %p100
    %s102 = ssub.s32 %s16, %s28
    %s103 = ssub.s32 %s17, %s24
    %s104 = sor.u32 %s102, %s103
    %p105 = scmp.eq.s32.totalorder %s104, 0
    %s107 = sadd.s32 %s106, 1
    %s108 = scalar_select %p105, %s106, %s107
    %p111 = pneg %p105
    %p112 = scmp.eq.s32.totalorder %s9, 1
    %p113 = por %p111, %p112
    %p114 = scmp.ne.s32.totalorder %s106, %s109
    %p115 = scmp.eq.s32.totalorder %s9, 0
    %p116 = por %p114, %p115
    %p117 = scmp.ne.s32.totalorder %s106, %s109
    %p118 = scmp.eq.s32.totalorder %s14, 1
    %p119 = por %p117, %p118
    %p120 = scmp.ne.s32.totalorder %s109, %s110
    %p121 = scmp.eq.s32.totalorder %s14, 0
    %p122 = por %p120, %p121
    %p123 = scmp.ne.s32.totalorder %s109, %s110
    %p124 = scmp.eq.s32.totalorder %s15, 1
    %p125 = por %p123, %p124
    %p127 = scmp.ne.s32.totalorder %s110, %s126
    %p128 = scmp.eq.s32.totalorder %s15, 0
    %p129 = por %p127, %p128
    %p130 = scmp.le.s32.totalorder 1, %s9
    %p131 = scmp.lt.s32.totalorder %s9, 3
    %p132 = pnand %p130, %p131
    %p133 = pneg %p132
    // Predicated region
    $region9: #{_separable_conv2d_impl.1} parent=5 // pred_check
      _
    $region10: #{_separable_conv2d_impl.1} parent=5 // pred_check_branch
      %135 = sbr.rel (%p132) target = $region12
    $region11: #{_separable_conv2d_impl.1} parent=5 // pred_region
      %s136 = ssub.s32 %s9, 1
      // Predicated region
      $region13: #{_separable_conv2d_impl.1} parent=11 // pred_check
        %p137 = pneg %p68
      $region14: #{_separable_conv2d_impl.1} parent=11 // pred_check_branch
        %139 = sbr.rel (%p137) target = $region16
      $region15: #{_separable_conv2d_impl.1} parent=11 // pred_region
        _
      $region16: #{_separable_conv2d_impl.1} parent=11 // pred_fallthru
        _
      // Predicated region
      $region17: #{_separable_conv2d_impl.1} parent=11 // pred_check
        %p140 = pneg %p94
      $region18: #{_separable_conv2d_impl.1} parent=11 // pred_check_branch
        %142 = sbr.rel (%p140) target = $region20
      $region19: #{_separable_conv2d_impl.1} parent=11 // pred_region
        %p143 = scmp.lt.s32.totalorder %s19, 0
        %s144 = scalar_select %p143, %s19, 0
        %s145 = smul.addr %s144, 4
        %s146 = scalar_lea.vmem %s2, %s145
      $region20: #{_separable_conv2d_impl.1} parent=11 // pred_fallthru
        _
    $region12: #{_separable_conv2d_impl.1} parent=5 // pred_fallthru
      _
    %p147 = scmp.lt.s32.totalorder %s9, 2
    // Predicated region
    $region21: #{_separable_conv2d_impl.1} parent=5 // pred_check
      %p148 = pneg %p147
    $region22: #{_separable_conv2d_impl.1} parent=5 // pred_check_branch
      %150 = sbr.rel (%p148) target = $region24
    $region23: #{_separable_conv2d_impl.1} parent=5 // pred_region
      // Predicated region
      $region25: #{_separable_conv2d_impl.1} parent=23 // pred_check
        %p151 = pneg %p41
      $region26: #{_separable_conv2d_impl.1} parent=23 // pred_check_branch
        %153 = sbr.rel (%p151) target = $region28
      $region27: #{_separable_conv2d_impl.1} parent=23 // pred_region
        %p154 = scmp.lt.s32.totalorder %s16, 1
        %s155 = scalar_select %p154, %s16, 1
        %s156 = smul.addr %s155, 54
        %s157 = smul.addr %s156, 8
        %s158 = scalar_lea.vmem %s0, %s157
      $region28: #{_separable_conv2d_impl.1} parent=23 // pred_fallthru
        _
    $region24: #{_separable_conv2d_impl.1} parent=5 // pred_fallthru
      _
    %p159 = scmp.le.s32.totalorder 1, %s9
    %p160 = scmp.lt.s32.totalorder %s9, 3
    %p161 = pnand %p159, %p160
    %p162 = pneg %p161
    // Predicated region
    $region29: #{_separable_conv2d_impl.1} parent=5 // pred_check
      _
    $region30: #{_separable_conv2d_impl.1} parent=5 // pred_check_branch
      %164 = sbr.rel (%p161) target = $region32
    $region31: #{_separable_conv2d_impl.1} parent=5 // pred_region
      %s165 = ssub.s32 %s9, 1
      %p166 = scmp.lt.s32.totalorder %s18, 1
      %s167 = scalar_select %p166, %s18, 1
      %s168 = smul.addr %s167, 54
      %s169 = smul.addr %s168, 8
      %s170 = scalar_lea.vmem %s0, %s169
      %p171 = pneg %p47
      %p172 = pneg %p44
      %p173 = pneg %p68
      %p174 = pneg %p65
      %p175 = scmp.lt.s32.totalorder %s19, 0
      %s176 = scalar_select %p175, %s19, 0
      %s177 = smul.addr %s176, 4
      %s178 = scalar_lea.vmem %s2, %s177
      %p179 = pneg %p94
      %p180 = pneg %p91
      %p181 = pneg %p122
      %p182 = pneg %p119
      %p183 = scmp.lt.s32.totalorder %s18, 1
      %s184 = scalar_select %p183, %s18, 1
      %p185 = scmp.lt.s32.totalorder %s19, 0
      %s186 = scalar_select %p185, %s19, 0
      %s187 = smul.addr %s184, 32
      %s188 = sadd.s32 %s186, %s187
      %s189 = smul.addr %s188, 8
      %s190 = scalar_lea.vmem %s3, %s189
      %p191 = scmp.lt.s32.totalorder %s18, 1
      %s192 = scalar_select %p191, %s18, 1
      %s193 = smul.addr %s192, 54
      %s194 = smul.addr %s193, 8
      %s195 = scalar_lea.vmem %s0, %s194
      %p196 = scmp.lt.s32.totalorder %s19, 0
      %s197 = scalar_select %p196, %s19, 0
      %s198 = smul.addr %s197, 4
      %s199 = scalar_lea.vmem %s2, %s198
      %p200 = scmp.lt.s32.totalorder %s18, 1
      %s201 = scalar_select %p200, %s18, 1
      %p202 = scmp.lt.s32.totalorder %s19, 0
      %s203 = scalar_select %p202, %s19, 0
      %s204 = smul.addr %s201, 32
      %s205 = sadd.s32 %s203, %s204
      %s206 = smul.addr %s205, 8
      %s207 = scalar_lea.vmem %s3, %s206
      %p209 = scmp.eq.s32.totalorder %s19, 0
      // Predicated region
      $region33: #{_separable_conv2d_impl.1} parent=31 // pred_check
        %p210 = pneg %p209
      $region34: #{_separable_conv2d_impl.1} parent=31 // pred_check_branch
        %212 = sbr.rel (%p210) target = $region36
      $region35: #{_separable_conv2d_impl.1} parent=31 // pred_region
        %v213 = vld [vmem:[%s1] sm:$0xff]
        %v214 = vld [vmem:[%s1 + $0x8] sm:$0x1]
        %v215 = vld [vmem:[%s195] sm:$0xff]
        %v216 = vld [vmem:[%s195 + $0x8] sm:$0xff]
        %v217 = vld [vmem:[%s195 + $0x18] sm:$0xff]
        %v218 = vld [vmem:[%s195 + $0x20] sm:$0xff]
        %v219 = vld [vmem:[%s195 + $0x30] sm:$0xff]
        %v220 = vld [vmem:[%s195 + $0x38] sm:$0xff]
        %v221 = vld [vmem:[%s195 + $0x48] sm:$0xff]
        %v222 = vld [vmem:[%s195 + $0x50] sm:$0xff]
        %v223 = vld [vmem:[%s195 + $0x60] sm:$0xff]
        %v224 = vld [vmem:[%s195 + $0x68] sm:$0xff]
        %v225 = vld [vmem:[%s195 + $0x78] sm:$0xff]
        %v226 = vld [vmem:[%s195 + $0x80] sm:$0xff]
        %v227 = vld [vmem:[%s195 + $0x90] sm:$0xff]
        %v228 = vld [vmem:[%s195 + $0x98] sm:$0xff]
        %v229 = vld [vmem:[%s195 + $0xa8] sm:$0xff]
        %v230 = vld [vmem:[%s195 + $0xb0] sm:$0xff]
        %v231 = vld [vmem:[%s195 + $0xc0] sm:$0xff]
        %v232 = vld [vmem:[%s195 + $0xc8] sm:$0xff]
        %v233 = vld [vmem:[%s195 + $0xd8] sm:$0xff]
        %v234 = vld [vmem:[%s195 + $0xe0] sm:$0xff]
        %v235 = vld [vmem:[%s195 + $0xf0] sm:$0xff]
        %v236 = vld [vmem:[%s195 + $0xf8] sm:$0xff]
        %v237 = vld [vmem:[%s195 + $0x108] sm:$0xff]
        %v238 = vld [vmem:[%s195 + $0x110] sm:$0xff]
        %v239 = vld [vmem:[%s195 + $0x120] sm:$0xff]
        %v240 = vld [vmem:[%s195 + $0x128] sm:$0xff]
        %v241 = vld [vmem:[%s195 + $0x138] sm:$0xff]
        %v242 = vld [vmem:[%s195 + $0x140] sm:$0xff]
        %v243 = vld [vmem:[%s195 + $0x150] sm:$0xff]
        %v244 = vld [vmem:[%s195 + $0x158] sm:$0xff]
        %v245 = vld [vmem:[%s195 + $0x168] sm:$0xff]
        %v246 = vld [vmem:[%s195 + $0x170] sm:$0xff]
        %v247 = vlaneseq
        %v248 = vshrl.u32 %v247, 7
        %v249 = vsub.s32 0, %v248
        %v250 = vrot.slane %v213, %v249
        %v251 = vmul.f32 %v215, %v250
        %v252 = vmul.f32 %v216, %v250
        %v253 = vmul.f32 %v217, %v250
        %v254 = vmul.f32 %v218, %v250
        %v255 = vmul.f32 %v219, %v250
        %v256 = vmul.f32 %v220, %v250
        %v257 = vmul.f32 %v221, %v250
        %v258 = vmul.f32 %v222, %v250
        %v259 = vmul.f32 %v223, %v250
        %v260 = vmul.f32 %v224, %v250
        %v261 = vmul.f32 %v225, %v250
        %v262 = vmul.f32 %v226, %v250
        %v263 = vmul.f32 %v227, %v250
        %v264 = vmul.f32 %v228, %v250
        %v265 = vmul.f32 %v229, %v250
        %v266 = vmul.f32 %v230, %v250
        %v267 = vmul.f32 %v231, %v250
        %v268 = vmul.f32 %v232, %v250
        %v269 = vmul.f32 %v233, %v250
        %v270 = vmul.f32 %v234, %v250
        %v271 = vmul.f32 %v235, %v250
        %v272 = vmul.f32 %v236, %v250
        %v273 = vmul.f32 %v237, %v250
        %v274 = vmul.f32 %v238, %v250
        %v275 = vmul.f32 %v239, %v250
        %v276 = vmul.f32 %v240, %v250
        %v277 = vmul.f32 %v241, %v250
        %v278 = vmul.f32 %v242, %v250
        %v279 = vmul.f32 %v243, %v250
        %v280 = vmul.f32 %v244, %v250
        %v281 = vmul.f32 %v245, %v250
        %v282 = vmul.f32 %v246, %v250
        %v283 = vld [vmem:[%s195 + $0x1] sm:$0xff]
        %v284 = vld [vmem:[%s195 + $0x9] sm:$0xff]
        %v285 = vld [vmem:[%s195 + $0x19] sm:$0xff]
        %v286 = vld [vmem:[%s195 + $0x21] sm:$0xff]
        %v287 = vld [vmem:[%s195 + $0x31] sm:$0xff]
        %v288 = vld [vmem:[%s195 + $0x39] sm:$0xff]
        %v289 = vld [vmem:[%s195 + $0x49] sm:$0xff]
        %v290 = vld [vmem:[%s195 + $0x51] sm:$0xff]
        %v291 = vld [vmem:[%s195 + $0x61] sm:$0xff]
        %v292 = vld [vmem:[%s195 + $0x69] sm:$0xff]
        %v293 = vld [vmem:[%s195 + $0x79] sm:$0xff]
        %v294 = vld [vmem:[%s195 + $0x81] sm:$0xff]
        %v295 = vld [vmem:[%s195 + $0x91] sm:$0xff]
        %v296 = vld [vmem:[%s195 + $0x99] sm:$0xff]
        %v297 = vld [vmem:[%s195 + $0xa9] sm:$0xff]
        %v298 = vld [vmem:[%s195 + $0xb1] sm:$0xff]
        %v299 = vld [vmem:[%s195 + $0xc1] sm:$0xff]
        %v300 = vld [vmem:[%s195 + $0xc9] sm:$0xff]
        %v301 = vld [vmem:[%s195 + $0xd9] sm:$0xff]
        %v302 = vld [vmem:[%s195 + $0xe1] sm:$0xff]
        %v303 = vld [vmem:[%s195 + $0xf1] sm:$0xff]
        %v304 = vld [vmem:[%s195 + $0xf9] sm:$0xff]
        %v305 = vld [vmem:[%s195 + $0x109] sm:$0xff]
        %v306 = vld [vmem:[%s195 + $0x111] sm:$0xff]
        %v307 = vld [vmem:[%s195 + $0x121] sm:$0xff]
        %v308 = vld [vmem:[%s195 + $0x129] sm:$0xff]
        %v309 = vld [vmem:[%s195 + $0x139] sm:$0xff]
        %v310 = vld [vmem:[%s195 + $0x141] sm:$0xff]
        %v311 = vld [vmem:[%s195 + $0x151] sm:$0xff]
        %v312 = vld [vmem:[%s195 + $0x159] sm:$0xff]
        %v313 = vld [vmem:[%s195 + $0x169] sm:$0xff]
        %v314 = vld [vmem:[%s195 + $0x171] sm:$0xff]
        %v315 = vlaneseq
        %v316 = vshrl.u32 %v315, 7
        %v317 = vsub.s32 1, %v316
        %v318 = vrot.slane %v213, %v317
        %v319 = vmul.f32 %v283, %v318
        %v320 = vmul.f32 %v284, %v318
        %v321 = vmul.f32 %v285, %v318
        %v322 = vmul.f32 %v286, %v318
        %v323 = vmul.f32 %v287, %v318
        %v324 = vmul.f32 %v288, %v318
        %v325 = vmul.f32 %v289, %v318
        %v326 = vmul.f32 %v290, %v318
        %v327 = vmul.f32 %v291, %v318
        %v328 = vmul.f32 %v292, %v318
        %v329 = vmul.f32 %v293, %v318
        %v330 = vmul.f32 %v294, %v318
        %v331 = vmul.f32 %v295, %v318
        %v332 = vmul.f32 %v296, %v318
        %v333 = vmul.f32 %v297, %v318
        %v334 = vmul.f32 %v298, %v318
        %v335 = vmul.f32 %v299, %v318
        %v336 = vmul.f32 %v300, %v318
        %v337 = vmul.f32 %v301, %v318
        %v338 = vmul.f32 %v302, %v318
        %v339 = vmul.f32 %v303, %v318
        %v340 = vmul.f32 %v304, %v318
        %v341 = vmul.f32 %v305, %v318
        %v342 = vmul.f32 %v306, %v318
        %v343 = vmul.f32 %v307, %v318
        %v344 = vmul.f32 %v308, %v318
        %v345 = vmul.f32 %v309, %v318
        %v346 = vmul.f32 %v310, %v318
        %v347 = vmul.f32 %v311, %v318
        %v348 = vmul.f32 %v312, %v318
        %v349 = vmul.f32 %v313, %v318
        %v350 = vmul.f32 %v314, %v318
        %v351 = vadd.f32 %v251, %v319
        %v352 = vadd.f32 %v252, %v320
        %v353 = vadd.f32 %v253, %v321
        %v354 = vadd.f32 %v254, %v322
        %v355 = vadd.f32 %v255, %v323
        %v356 = vadd.f32 %v256, %v324
        %v357 = vadd.f32 %v257, %v325
        %v358 = vadd.f32 %v258, %v326
        %v359 = vadd.f32 %v259, %v327
        %v360 = vadd.f32 %v260, %v328
        %v361 = vadd.f32 %v261, %v329
        %v362 = vadd.f32 %v262, %v330
        %v363 = vadd.f32 %v263, %v331
        %v364 = vadd.f32 %v264, %v332
        %v365 = vadd.f32 %v265, %v333
        %v366 = vadd.f32 %v266, %v334
        %v367 = vadd.f32 %v267, %v335
        %v368 = vadd.f32 %v268, %v336
        %v369 = vadd.f32 %v269, %v337
        %v370 = vadd.f32 %v270, %v338
        %v371 = vadd.f32 %v271, %v339
        %v372 = vadd.f32 %v272, %v340
        %v373 = vadd.f32 %v273, %v341
        %v374 = vadd.f32 %v274, %v342
        %v375 = vadd.f32 %v275, %v343
        %v376 = vadd.f32 %v276, %v344
        %v377 = vadd.f32 %v277, %v345
        %v378 = vadd.f32 %v278, %v346
        %v379 = vadd.f32 %v279, %v347
        %v380 = vadd.f32 %v280, %v348
        %v381 = vadd.f32 %v281, %v349
        %v382 = vadd.f32 %v282, %v350
        %v383 = vld [vmem:[%s195 + $0x2] sm:$0xff]
        %v384 = vld [vmem:[%s195 + $0xa] sm:$0xff]
        %v385 = vld [vmem:[%s195 + $0x1a] sm:$0xff]
        %v386 = vld [vmem:[%s195 + $0x22] sm:$0xff]
        %v387 = vld [vmem:[%s195 + $0x32] sm:$0xff]
        %v388 = vld [vmem:[%s195 + $0x3a] sm:$0xff]
        %v389 = vld [vmem:[%s195 + $0x4a] sm:$0xff]
        %v390 = vld [vmem:[%s195 + $0x52] sm:$0xff]
        %v391 = vld [vmem:[%s195 + $0x62] sm:$0xff]
        %v392 = vld [vmem:[%s195 + $0x6a] sm:$0xff]
        %v393 = vld [vmem:[%s195 + $0x7a] sm:$0xff]
        %v394 = vld [vmem:[%s195 + $0x82] sm:$0xff]
        %v395 = vld [vmem:[%s195 + $0x92] sm:$0xff]
        %v396 = vld [vmem:[%s195 + $0x9a] sm:$0xff]
        %v397 = vld [vmem:[%s195 + $0xaa] sm:$0xff]
        %v398 = vld [vmem:[%s195 + $0xb2] sm:$0xff]
        %v399 = vld [vmem:[%s195 + $0xc2] sm:$0xff]
        %v400 = vld [vmem:[%s195 + $0xca] sm:$0xff]
        %v401 = vld [vmem:[%s195 + $0xda] sm:$0xff]
        %v402 = vld [vmem:[%s195 + $0xe2] sm:$0xff]
        %v403 = vld [vmem:[%s195 + $0xf2] sm:$0xff]
        %v404 = vld [vmem:[%s195 + $0xfa] sm:$0xff]
        %v405 = vld [vmem:[%s195 + $0x10a] sm:$0xff]
        %v406 = vld [vmem:[%s195 + $0x112] sm:$0xff]
        %v407 = vld [vmem:[%s195 + $0x122] sm:$0xff]
        %v408 = vld [vmem:[%s195 + $0x12a] sm:$0xff]
        %v409 = vld [vmem:[%s195 + $0x13a] sm:$0xff]
        %v410 = vld [vmem:[%s195 + $0x142] sm:$0xff]
        %v411 = vld [vmem:[%s195 + $0x152] sm:$0xff]
        %v412 = vld [vmem:[%s195 + $0x15a] sm:$0xff]
        %v413 = vld [vmem:[%s195 + $0x16a] sm:$0xff]
        %v414 = vld [vmem:[%s195 + $0x172] sm:$0xff]
        %v415 = vlaneseq
        %v416 = vshrl.u32 %v415, 7
        %v417 = vsub.s32 2, %v416
        %v418 = vrot.slane %v213, %v417
        %v419 = vmul.f32 %v383, %v418
        %v420 = vmul.f32 %v384, %v418
        %v421 = vmul.f32 %v385, %v418
        %v422 = vmul.f32 %v386, %v418
        %v423 = vmul.f32 %v387, %v418
        %v424 = vmul.f32 %v388, %v418
        %v425 = vmul.f32 %v389, %v418
        %v426 = vmul.f32 %v390, %v418
        %v427 = vmul.f32 %v391, %v418
        %v428 = vmul.f32 %v392, %v418
        %v429 = vmul.f32 %v393, %v418
        %v430 = vmul.f32 %v394, %v418
        %v431 = vmul.f32 %v395, %v418
        %v432 = vmul.f32 %v396, %v418
        %v433 = vmul.f32 %v397, %v418
        %v434 = vmul.f32 %v398, %v418
        %v435 = vmul.f32 %v399, %v418
        %v436 = vmul.f32 %v400, %v418
        %v437 = vmul.f32 %v401, %v418
        %v438 = vmul.f32 %v402, %v418
        %v439 = vmul.f32 %v403, %v418
        %v440 = vmul.f32 %v404, %v418
        %v441 = vmul.f32 %v405, %v418
        %v442 = vmul.f32 %v406, %v418
        %v443 = vmul.f32 %v407, %v418
        %v444 = vmul.f32 %v408, %v418
        %v445 = vmul.f32 %v409, %v418
        %v446 = vmul.f32 %v410, %v418
        %v447 = vmul.f32 %v411, %v418
        %v448 = vmul.f32 %v412, %v418
        %v449 = vmul.f32 %v413, %v418
        %v450 = vmul.f32 %v414, %v418
        %v451 = vadd.f32 %v351, %v419
        %v452 = vadd.f32 %v352, %v420
        %v453 = vadd.f32 %v353, %v421
        %v454 = vadd.f32 %v354, %v422
        %v455 = vadd.f32 %v355, %v423
        %v456 = vadd.f32 %v356, %v424
        %v457 = vadd.f32 %v357, %v425
        %v458 = vadd.f32 %v358, %v426
        %v459 = vadd.f32 %v359, %v427
        %v460 = vadd.f32 %v360, %v428
        %v461 = vadd.f32 %v361, %v429
        %v462 = vadd.f32 %v362, %v430
        %v463 = vadd.f32 %v363, %v431
        %v464 = vadd.f32 %v364, %v432
        %v465 = vadd.f32 %v365, %v433
        %v466 = vadd.f32 %v366, %v434
        %v467 = vadd.f32 %v367, %v435
        %v468 = vadd.f32 %v368, %v436
        %v469 = vadd.f32 %v369, %v437
        %v470 = vadd.f32 %v370, %v438
        %v471 = vadd.f32 %v371, %v439
        %v472 = vadd.f32 %v372, %v440
        %v473 = vadd.f32 %v373, %v441
        %v474 = vadd.f32 %v374, %v442
        %v475 = vadd.f32 %v375, %v443
        %v476 = vadd.f32 %v376, %v444
        %v477 = vadd.f32 %v377, %v445
        %v478 = vadd.f32 %v378, %v446
        %v479 = vadd.f32 %v379, %v447
        %v480 = vadd.f32 %v380, %v448
        %v481 = vadd.f32 %v381, %v449
        %v482 = vadd.f32 %v382, %v450
        %s483 = scalar_lea.vmem %s195, 24
        %v484 = vld [vmem:[%s483] sm:$0xff]
        %v485 = vld [vmem:[%s483 + $0x8] sm:$0xff]
        %v486 = vld [vmem:[%s483 + $0x18] sm:$0xff]
        %v487 = vld [vmem:[%s483 + $0x20] sm:$0xff]
        %v488 = vld [vmem:[%s483 + $0x30] sm:$0xff]
        %v489 = vld [vmem:[%s483 + $0x38] sm:$0xff]
        %v490 = vld [vmem:[%s483 + $0x48] sm:$0xff]
        %v491 = vld [vmem:[%s483 + $0x50] sm:$0xff]
        %v492 = vld [vmem:[%s483 + $0x60] sm:$0xff]
        %v493 = vld [vmem:[%s483 + $0x68] sm:$0xff]
        %v494 = vld [vmem:[%s483 + $0x78] sm:$0xff]
        %v495 = vld [vmem:[%s483 + $0x80] sm:$0xff]
        %v496 = vld [vmem:[%s483 + $0x90] sm:$0xff]
        %v497 = vld [vmem:[%s483 + $0x98] sm:$0xff]
        %v498 = vld [vmem:[%s483 + $0xa8] sm:$0xff]
        %v499 = vld [vmem:[%s483 + $0xb0] sm:$0xff]
        %v500 = vld [vmem:[%s483 + $0xc0] sm:$0xff]
        %v501 = vld [vmem:[%s483 + $0xc8] sm:$0xff]
        %v502 = vld [vmem:[%s483 + $0xd8] sm:$0xff]
        %v503 = vld [vmem:[%s483 + $0xe0] sm:$0xff]
        %v504 = vld [vmem:[%s483 + $0xf0] sm:$0xff]
        %v505 = vld [vmem:[%s483 + $0xf8] sm:$0xff]
        %v506 = vld [vmem:[%s483 + $0x108] sm:$0xff]
        %v507 = vld [vmem:[%s483 + $0x110] sm:$0xff]
        %v508 = vld [vmem:[%s483 + $0x120] sm:$0xff]
        %v509 = vld [vmem:[%s483 + $0x128] sm:$0xff]
        %v510 = vld [vmem:[%s483 + $0x138] sm:$0xff]
        %v511 = vld [vmem:[%s483 + $0x140] sm:$0xff]
        %v512 = vld [vmem:[%s483 + $0x150] sm:$0xff]
        %v513 = vld [vmem:[%s483 + $0x158] sm:$0xff]
        %v514 = vld [vmem:[%s483 + $0x168] sm:$0xff]
        %v515 = vld [vmem:[%s483 + $0x170] sm:$0xff]
        %v516 = vlaneseq
        %v517 = vshrl.u32 %v516, 7
        %v518 = vsub.s32 3, %v517
        %v519 = vrot.slane %v213, %v518
        %v520 = vmul.f32 %v484, %v519
        %v521 = vmul.f32 %v485, %v519
        %v522 = vmul.f32 %v486, %v519
        %v523 = vmul.f32 %v487, %v519
        %v524 = vmul.f32 %v488, %v519
        %v525 = vmul.f32 %v489, %v519
        %v526 = vmul.f32 %v490, %v519
        %v527 = vmul.f32 %v491, %v519
        %v528 = vmul.f32 %v492, %v519
        %v529 = vmul.f32 %v493, %v519
        %v530 = vmul.f32 %v494, %v519
        %v531 = vmul.f32 %v495, %v519
        %v532 = vmul.f32 %v496, %v519
        %v533 = vmul.f32 %v497, %v519
        %v534 = vmul.f32 %v498, %v519
        %v535 = vmul.f32 %v499, %v519
        %v536 = vmul.f32 %v500, %v519
        %v537 = vmul.f32 %v501, %v519
        %v538 = vmul.f32 %v502, %v519
        %v539 = vmul.f32 %v503, %v519
        %v540 = vmul.f32 %v504, %v519
        %v541 = vmul.f32 %v505, %v519
        %v542 = vmul.f32 %v506, %v519
        %v543 = vmul.f32 %v507, %v519
        %v544 = vmul.f32 %v508, %v519
        %v545 = vmul.f32 %v509, %v519
        %v546 = vmul.f32 %v510, %v519
        %v547 = vmul.f32 %v511, %v519
        %v548 = vmul.f32 %v512, %v519
        %v549 = vmul.f32 %v513, %v519
        %v550 = vmul.f32 %v514, %v519
        %v551 = vmul.f32 %v515, %v519
        %v552 = vadd.f32 %v451, %v520
        %v553 = vadd.f32 %v452, %v521
        %v554 = vadd.f32 %v453, %v522
        %v555 = vadd.f32 %v454, %v523
        %v556 = vadd.f32 %v455, %v524
        %v557 = vadd.f32 %v456, %v525
        %v558 = vadd.f32 %v457, %v526
        %v559 = vadd.f32 %v458, %v527
        %v560 = vadd.f32 %v459, %v528
        %v561 = vadd.f32 %v460, %v529
        %v562 = vadd.f32 %v461, %v530
        %v563 = vadd.f32 %v462, %v531
        %v564 = vadd.f32 %v463, %v532
        %v565 = vadd.f32 %v464, %v533
        %v566 = vadd.f32 %v465, %v534
        %v567 = vadd.f32 %v466, %v535
        %v568 = vadd.f32 %v467, %v536
        %v569 = vadd.f32 %v468, %v537
        %v570 = vadd.f32 %v469, %v538
        %v571 = vadd.f32 %v470, %v539
        %v572 = vadd.f32 %v471, %v540
        %v573 = vadd.f32 %v472, %v541
        %v574 = vadd.f32 %v473, %v542
        %v575 = vadd.f32 %v474, %v543
        %v576 = vadd.f32 %v475, %v544
        %v577 = vadd.f32 %v476, %v545
        %v578 = vadd.f32 %v477, %v546
        %v579 = vadd.f32 %v478, %v547
        %v580 = vadd.f32 %v479, %v548
        %v581 = vadd.f32 %v480, %v549
        %v582 = vadd.f32 %v481, %v550
        %v583 = vadd.f32 %v482, %v551
        %v584 = vld [vmem:[%s483 + $0x1] sm:$0xff]
        %v585 = vld [vmem:[%s483 + $0x9] sm:$0xff]
        %v586 = vld [vmem:[%s483 + $0x19] sm:$0xff]
        %v587 = vld [vmem:[%s483 + $0x21] sm:$0xff]
        %v588 = vld [vmem:[%s483 + $0x31] sm:$0xff]
        %v589 = vld [vmem:[%s483 + $0x39] sm:$0xff]
        %v590 = vld [vmem:[%s483 + $0x49] sm:$0xff]
        %v591 = vld [vmem:[%s483 + $0x51] sm:$0xff]
        %v592 = vld [vmem:[%s483 + $0x61] sm:$0xff]
        %v593 = vld [vmem:[%s483 + $0x69] sm:$0xff]
        %v594 = vld [vmem:[%s483 + $0x79] sm:$0xff]
        %v595 = vld [vmem:[%s483 + $0x81] sm:$0xff]
        %v596 = vld [vmem:[%s483 + $0x91] sm:$0xff]
        %v597 = vld [vmem:[%s483 + $0x99] sm:$0xff]
        %v598 = vld [vmem:[%s483 + $0xa9] sm:$0xff]
        %v599 = vld [vmem:[%s483 + $0xb1] sm:$0xff]
        %v600 = vld [vmem:[%s483 + $0xc1] sm:$0xff]
        %v601 = vld [vmem:[%s483 + $0xc9] sm:$0xff]
        %v602 = vld [vmem:[%s483 + $0xd9] sm:$0xff]
        %v603 = vld [vmem:[%s483 + $0xe1] sm:$0xff]
        %v604 = vld [vmem:[%s483 + $0xf1] sm:$0xff]
        %v605 = vld [vmem:[%s483 + $0xf9] sm:$0xff]
        %v606 = vld [vmem:[%s483 + $0x109] sm:$0xff]
        %v607 = vld [vmem:[%s483 + $0x111] sm:$0xff]
        %v608 = vld [vmem:[%s483 + $0x121] sm:$0xff]
        %v609 = vld [vmem:[%s483 + $0x129] sm:$0xff]
        %v610 = vld [vmem:[%s483 + $0x139] sm:$0xff]
        %v611 = vld [vmem:[%s483 + $0x141] sm:$0xff]
        %v612 = vld [vmem:[%s483 + $0x151] sm:$0xff]
        %v613 = vld [vmem:[%s483 + $0x159] sm:$0xff]
        %v614 = vld [vmem:[%s483 + $0x169] sm:$0xff]
        %v615 = vld [vmem:[%s483 + $0x171] sm:$0xff]
        %v616 = vlaneseq
        %v617 = vshrl.u32 %v616, 7
        %v618 = vsub.s32 4, %v617
        %v619 = vrot.slane %v213, %v618
        %v620 = vmul.f32 %v584, %v619
        %v621 = vmul.f32 %v585, %v619
        %v622 = vmul.f32 %v586, %v619
        %v623 = vmul.f32 %v587, %v619
        %v624 = vmul.f32 %v588, %v619
        %v625 = vmul.f32 %v589, %v619
        %v626 = vmul.f32 %v590, %v619
        %v627 = vmul.f32 %v591, %v619
        %v628 = vmul.f32 %v592, %v619
        %v629 = vmul.f32 %v593, %v619
        %v630 = vmul.f32 %v594, %v619
        %v631 = vmul.f32 %v595, %v619
        %v632 = vmul.f32 %v596, %v619
        %v633 = vmul.f32 %v597, %v619
        %v634 = vmul.f32 %v598, %v619
        %v635 = vmul.f32 %v599, %v619
        %v636 = vmul.f32 %v600, %v619
        %v637 = vmul.f32 %v601, %v619
        %v638 = vmul.f32 %v602, %v619
        %v639 = vmul.f32 %v603, %v619
        %v640 = vmul.f32 %v604, %v619
        %v641 = vmul.f32 %v605, %v619
        %v642 = vmul.f32 %v606, %v619
        %v643 = vmul.f32 %v607, %v619
        %v644 = vmul.f32 %v608, %v619
        %v645 = vmul.f32 %v609, %v619
        %v646 = vmul.f32 %v610, %v619
        %v647 = vmul.f32 %v611, %v619
        %v648 = vmul.f32 %v612, %v619
        %v649 = vmul.f32 %v613, %v619
        %v650 = vmul.f32 %v614, %v619
        %v651 = vmul.f32 %v615, %v619
        %v652 = vadd.f32 %v552, %v620
        %v653 = vadd.f32 %v553, %v621
        %v654 = vadd.f32 %v554, %v622
        %v655 = vadd.f32 %v555, %v623
        %v656 = vadd.f32 %v556, %v624
        %v657 = vadd.f32 %v557, %v625
        %v658 = vadd.f32 %v558, %v626
        %v659 = vadd.f32 %v559, %v627
        %v660 = vadd.f32 %v560, %v628
        %v661 = vadd.f32 %v561, %v629
        %v662 = vadd.f32 %v562, %v630
        %v663 = vadd.f32 %v563, %v631
        %v664 = vadd.f32 %v564, %v632
        %v665 = vadd.f32 %v565, %v633
        %v666 = vadd.f32 %v566, %v634
        %v667 = vadd.f32 %v567, %v635
        %v668 = vadd.f32 %v568, %v636
        %v669 = vadd.f32 %v569, %v637
        %v670 = vadd.f32 %v570, %v638
        %v671 = vadd.f32 %v571, %v639
        %v672 = vadd.f32 %v572, %v640
        %v673 = vadd.f32 %v573, %v641
        %v674 = vadd.f32 %v574, %v642
        %v675 = vadd.f32 %v575, %v643
        %v676 = vadd.f32 %v576, %v644
        %v677 = vadd.f32 %v577, %v645
        %v678 = vadd.f32 %v578, %v646
        %v679 = vadd.f32 %v579, %v647
        %v680 = vadd.f32 %v580, %v648
        %v681 = vadd.f32 %v581, %v649
        %v682 = vadd.f32 %v582, %v650
        %v683 = vadd.f32 %v583, %v651
        %v684 = vld [vmem:[%s483 + $0x2] sm:$0xff]
        %v685 = vld [vmem:[%s483 + $0xa] sm:$0xff]
        %v686 = vld [vmem:[%s483 + $0x1a] sm:$0xff]
        %v687 = vld [vmem:[%s483 + $0x22] sm:$0xff]
        %v688 = vld [vmem:[%s483 + $0x32] sm:$0xff]
        %v689 = vld [vmem:[%s483 + $0x3a] sm:$0xff]
        %v690 = vld [vmem:[%s483 + $0x4a] sm:$0xff]
        %v691 = vld [vmem:[%s483 + $0x52] sm:$0xff]
        %v692 = vld [vmem:[%s483 + $0x62] sm:$0xff]
        %v693 = vld [vmem:[%s483 + $0x6a] sm:$0xff]
        %v694 = vld [vmem:[%s483 + $0x7a] sm:$0xff]
        %v695 = vld [vmem:[%s483 + $0x82] sm:$0xff]
        %v696 = vld [vmem:[%s483 + $0x92] sm:$0xff]
        %v697 = vld [vmem:[%s483 + $0x9a] sm:$0xff]
        %v698 = vld [vmem:[%s483 + $0xaa] sm:$0xff]
        %v699 = vld [vmem:[%s483 + $0xb2] sm:$0xff]
        %v700 = vld [vmem:[%s483 + $0xc2] sm:$0xff]
        %v701 = vld [vmem:[%s483 + $0xca] sm:$0xff]
        %v702 = vld [vmem:[%s483 + $0xda] sm:$0xff]
        %v703 = vld [vmem:[%s483 + $0xe2] sm:$0xff]
        %v704 = vld [vmem:[%s483 + $0xf2] sm:$0xff]
        %v705 = vld [vmem:[%s483 + $0xfa] sm:$0xff]
        %v706 = vld [vmem:[%s483 + $0x10a] sm:$0xff]
        %v707 = vld [vmem:[%s483 + $0x112] sm:$0xff]
        %v708 = vld [vmem:[%s483 + $0x122] sm:$0xff]
        %v709 = vld [vmem:[%s483 + $0x12a] sm:$0xff]
        %v710 = vld [vmem:[%s483 + $0x13a] sm:$0xff]
        %v711 = vld [vmem:[%s483 + $0x142] sm:$0xff]
        %v712 = vld [vmem:[%s483 + $0x152] sm:$0xff]
        %v713 = vld [vmem:[%s483 + $0x15a] sm:$0xff]
        %v714 = vld [vmem:[%s483 + $0x16a] sm:$0xff]
        %v715 = vld [vmem:[%s483 + $0x172] sm:$0xff]
        %v716 = vlaneseq
        %v717 = vshrl.u32 %v716, 7
        %v718 = vsub.s32 5, %v717
        %v719 = vrot.slane %v213, %v718
        %v720 = vmul.f32 %v684, %v719
        %v721 = vmul.f32 %v685, %v719
        %v722 = vmul.f32 %v686, %v719
        %v723 = vmul.f32 %v687, %v719
        %v724 = vmul.f32 %v688, %v719
        %v725 = vmul.f32 %v689, %v719
        %v726 = vmul.f32 %v690, %v719
        %v727 = vmul.f32 %v691, %v719
        %v728 = vmul.f32 %v692, %v719
        %v729 = vmul.f32 %v693, %v719
        %v730 = vmul.f32 %v694, %v719
        %v731 = vmul.f32 %v695, %v719
        %v732 = vmul.f32 %v696, %v719
        %v733 = vmul.f32 %v697, %v719
        %v734 = vmul.f32 %v698, %v719
        %v735 = vmul.f32 %v699, %v719
        %v736 = vmul.f32 %v700, %v719
        %v737 = vmul.f32 %v701, %v719
        %v738 = vmul.f32 %v702, %v719
        %v739 = vmul.f32 %v703, %v719
        %v740 = vmul.f32 %v704, %v719
        %v741 = vmul.f32 %v705, %v719
        %v742 = vmul.f32 %v706, %v719
        %v743 = vmul.f32 %v707, %v719
        %v744 = vmul.f32 %v708, %v719
        %v745 = vmul.f32 %v709, %v719
        %v746 = vmul.f32 %v710, %v719
        %v747 = vmul.f32 %v711, %v719
        %v748 = vmul.f32 %v712, %v719
        %v749 = vmul.f32 %v713, %v719
        %v750 = vmul.f32 %v714, %v719
        %v751 = vmul.f32 %v715, %v719
        %v752 = vadd.f32 %v652, %v720
        %v753 = vadd.f32 %v653, %v721
        %v754 = vadd.f32 %v654, %v722
        %v755 = vadd.f32 %v655, %v723
        %v756 = vadd.f32 %v656, %v724
        %v757 = vadd.f32 %v657, %v725
        %v758 = vadd.f32 %v658, %v726
        %v759 = vadd.f32 %v659, %v727
        %v760 = vadd.f32 %v660, %v728
        %v761 = vadd.f32 %v661, %v729
        %v762 = vadd.f32 %v662, %v730
        %v763 = vadd.f32 %v663, %v731
        %v764 = vadd.f32 %v664, %v732
        %v765 = vadd.f32 %v665, %v733
        %v766 = vadd.f32 %v666, %v734
        %v767 = vadd.f32 %v667, %v735
        %v768 = vadd.f32 %v668, %v736
        %v769 = vadd.f32 %v669, %v737
        %v770 = vadd.f32 %v670, %v738
        %v771 = vadd.f32 %v671, %v739
        %v772 = vadd.f32 %v672, %v740
        %v773 = vadd.f32 %v673, %v741
        %v774 = vadd.f32 %v674, %v742
        %v775 = vadd.f32 %v675, %v743
        %v776 = vadd.f32 %v676, %v744
        %v777 = vadd.f32 %v677, %v745
        %v778 = vadd.f32 %v678, %v746
        %v779 = vadd.f32 %v679, %v747
        %v780 = vadd.f32 %v680, %v748
        %v781 = vadd.f32 %v681, %v749
        %v782 = vadd.f32 %v682, %v750
        %v783 = vadd.f32 %v683, %v751
        %s784 = scalar_lea.vmem %s195, 48
        %v785 = vld [vmem:[%s784] sm:$0xff]
        %v786 = vld [vmem:[%s784 + $0x8] sm:$0xff]
        %v787 = vld [vmem:[%s784 + $0x18] sm:$0xff]
        %v788 = vld [vmem:[%s784 + $0x20] sm:$0xff]
        %v789 = vld [vmem:[%s784 + $0x30] sm:$0xff]
        %v790 = vld [vmem:[%s784 + $0x38] sm:$0xff]
        %v791 = vld [vmem:[%s784 + $0x48] sm:$0xff]
        %v792 = vld [vmem:[%s784 + $0x50] sm:$0xff]
        %v793 = vld [vmem:[%s784 + $0x60] sm:$0xff]
        %v794 = vld [vmem:[%s784 + $0x68] sm:$0xff]
        %v795 = vld [vmem:[%s784 + $0x78] sm:$0xff]
        %v796 = vld [vmem:[%s784 + $0x80] sm:$0xff]
        %v797 = vld [vmem:[%s784 + $0x90] sm:$0xff]
        %v798 = vld [vmem:[%s784 + $0x98] sm:$0xff]
        %v799 = vld [vmem:[%s784 + $0xa8] sm:$0xff]
        %v800 = vld [vmem:[%s784 + $0xb0] sm:$0xff]
        %v801 = vld [vmem:[%s784 + $0xc0] sm:$0xff]
        %v802 = vld [vmem:[%s784 + $0xc8] sm:$0xff]
        %v803 = vld [vmem:[%s784 + $0xd8] sm:$0xff]
        %v804 = vld [vmem:[%s784 + $0xe0] sm:$0xff]
        %v805 = vld [vmem:[%s784 + $0xf0] sm:$0xff]
        %v806 = vld [vmem:[%s784 + $0xf8] sm:$0xff]
        %v807 = vld [vmem:[%s784 + $0x108] sm:$0xff]
        %v808 = vld [vmem:[%s784 + $0x110] sm:$0xff]
        %v809 = vld [vmem:[%s784 + $0x120] sm:$0xff]
        %v810 = vld [vmem:[%s784 + $0x128] sm:$0xff]
        %v811 = vld [vmem:[%s784 + $0x138] sm:$0xff]
        %v812 = vld [vmem:[%s784 + $0x140] sm:$0xff]
        %v813 = vld [vmem:[%s784 + $0x150] sm:$0xff]
        %v814 = vld [vmem:[%s784 + $0x158] sm:$0xff]
        %v815 = vld [vmem:[%s784 + $0x168] sm:$0xff]
        %v816 = vld [vmem:[%s784 + $0x170] sm:$0xff]
        %v817 = vlaneseq
        %v818 = vshrl.u32 %v817, 7
        %v819 = vsub.s32 6, %v818
        %v820 = vrot.slane %v213, %v819
        %v821 = vmul.f32 %v785, %v820
        %v822 = vmul.f32 %v786, %v820
        %v823 = vmul.f32 %v787, %v820
        %v824 = vmul.f32 %v788, %v820
        %v825 = vmul.f32 %v789, %v820
        %v826 = vmul.f32 %v790, %v820
        %v827 = vmul.f32 %v791, %v820
        %v828 = vmul.f32 %v792, %v820
        %v829 = vmul.f32 %v793, %v820
        %v830 = vmul.f32 %v794, %v820
        %v831 = vmul.f32 %v795, %v820
        %v832 = vmul.f32 %v796, %v820
        %v833 = vmul.f32 %v797, %v820
        %v834 = vmul.f32 %v798, %v820
        %v835 = vmul.f32 %v799, %v820
        %v836 = vmul.f32 %v800, %v820
        %v837 = vmul.f32 %v801, %v820
        %v838 = vmul.f32 %v802, %v820
        %v839 = vmul.f32 %v803, %v820
        %v840 = vmul.f32 %v804, %v820
        %v841 = vmul.f32 %v805, %v820
        %v842 = vmul.f32 %v806, %v820
        %v843 = vmul.f32 %v807, %v820
        %v844 = vmul.f32 %v808, %v820
        %v845 = vmul.f32 %v809, %v820
        %v846 = vmul.f32 %v810, %v820
        %v847 = vmul.f32 %v811, %v820
        %v848 = vmul.f32 %v812, %v820
        %v849 = vmul.f32 %v813, %v820
        %v850 = vmul.f32 %v814, %v820
        %v851 = vmul.f32 %v815, %v820
        %v852 = vmul.f32 %v816, %v820
        %v853 = vadd.f32 %v752, %v821
        %v854 = vadd.f32 %v753, %v822
        %v855 = vadd.f32 %v754, %v823
        %v856 = vadd.f32 %v755, %v824
        %v857 = vadd.f32 %v756, %v825
        %v858 = vadd.f32 %v757, %v826
        %v859 = vadd.f32 %v758, %v827
        %v860 = vadd.f32 %v759, %v828
        %v861 = vadd.f32 %v760, %v829
        %v862 = vadd.f32 %v761, %v830
        %v863 = vadd.f32 %v762, %v831
        %v864 = vadd.f32 %v763, %v832
        %v865 = vadd.f32 %v764, %v833
        %v866 = vadd.f32 %v765, %v834
        %v867 = vadd.f32 %v766, %v835
        %v868 = vadd.f32 %v767, %v836
        %v869 = vadd.f32 %v768, %v837
        %v870 = vadd.f32 %v769, %v838
        %v871 = vadd.f32 %v770, %v839
        %v872 = vadd.f32 %v771, %v840
        %v873 = vadd.f32 %v772, %v841
        %v874 = vadd.f32 %v773, %v842
        %v875 = vadd.f32 %v774, %v843
        %v876 = vadd.f32 %v775, %v844
        %v877 = vadd.f32 %v776, %v845
        %v878 = vadd.f32 %v777, %v846
        %v879 = vadd.f32 %v778, %v847
        %v880 = vadd.f32 %v779, %v848
        %v881 = vadd.f32 %v780, %v849
        %v882 = vadd.f32 %v781, %v850
        %v883 = vadd.f32 %v782, %v851
        %v884 = vadd.f32 %v783, %v852
        %v885 = vld [vmem:[%s784 + $0x1] sm:$0xff]
        %v886 = vld [vmem:[%s784 + $0x9] sm:$0xff]
        %v887 = vld [vmem:[%s784 + $0x19] sm:$0xff]
        %v888 = vld [vmem:[%s784 + $0x21] sm:$0xff]
        %v889 = vld [vmem:[%s784 + $0x31] sm:$0xff]
        %v890 = vld [vmem:[%s784 + $0x39] sm:$0xff]
        %v891 = vld [vmem:[%s784 + $0x49] sm:$0xff]
        %v892 = vld [vmem:[%s784 + $0x51] sm:$0xff]
        %v893 = vld [vmem:[%s784 + $0x61] sm:$0xff]
        %v894 = vld [vmem:[%s784 + $0x69] sm:$0xff]
        %v895 = vld [vmem:[%s784 + $0x79] sm:$0xff]
        %v896 = vld [vmem:[%s784 + $0x81] sm:$0xff]
        %v897 = vld [vmem:[%s784 + $0x91] sm:$0xff]
        %v898 = vld [vmem:[%s784 + $0x99] sm:$0xff]
        %v899 = vld [vmem:[%s784 + $0xa9] sm:$0xff]
        %v900 = vld [vmem:[%s784 + $0xb1] sm:$0xff]
        %v901 = vld [vmem:[%s784 + $0xc1] sm:$0xff]
        %v902 = vld [vmem:[%s784 + $0xc9] sm:$0xff]
        %v903 = vld [vmem:[%s784 + $0xd9] sm:$0xff]
        %v904 = vld [vmem:[%s784 + $0xe1] sm:$0xff]
        %v905 = vld [vmem:[%s784 + $0xf1] sm:$0xff]
        %v906 = vld [vmem:[%s784 + $0xf9] sm:$0xff]
        %v907 = vld [vmem:[%s784 + $0x109] sm:$0xff]
        %v908 = vld [vmem:[%s784 + $0x111] sm:$0xff]
        %v909 = vld [vmem:[%s784 + $0x121] sm:$0xff]
        %v910 = vld [vmem:[%s784 + $0x129] sm:$0xff]
        %v911 = vld [vmem:[%s784 + $0x139] sm:$0xff]
        %v912 = vld [vmem:[%s784 + $0x141] sm:$0xff]
        %v913 = vld [vmem:[%s784 + $0x151] sm:$0xff]
        %v914 = vld [vmem:[%s784 + $0x159] sm:$0xff]
        %v915 = vld [vmem:[%s784 + $0x169] sm:$0xff]
        %v916 = vld [vmem:[%s784 + $0x171] sm:$0xff]
        %v917 = vlaneseq
        %v918 = vshrl.u32 %v917, 7
        %v919 = vsub.s32 7, %v918
        %v920 = vrot.slane %v213, %v919
        %v921 = vmul.f32 %v885, %v920
        %v922 = vmul.f32 %v886, %v920
        %v923 = vmul.f32 %v887, %v920
        %v924 = vmul.f32 %v888, %v920
        %v925 = vmul.f32 %v889, %v920
        %v926 = vmul.f32 %v890, %v920
        %v927 = vmul.f32 %v891, %v920
        %v928 = vmul.f32 %v892, %v920
        %v929 = vmul.f32 %v893, %v920
        %v930 = vmul.f32 %v894, %v920
        %v931 = vmul.f32 %v895, %v920
        %v932 = vmul.f32 %v896, %v920
        %v933 = vmul.f32 %v897, %v920
        %v934 = vmul.f32 %v898, %v920
        %v935 = vmul.f32 %v899, %v920
        %v936 = vmul.f32 %v900, %v920
        %v937 = vmul.f32 %v901, %v920
        %v938 = vmul.f32 %v902, %v920
        %v939 = vmul.f32 %v903, %v920
        %v940 = vmul.f32 %v904, %v920
        %v941 = vmul.f32 %v905, %v920
        %v942 = vmul.f32 %v906, %v920
        %v943 = vmul.f32 %v907, %v920
        %v944 = vmul.f32 %v908, %v920
        %v945 = vmul.f32 %v909, %v920
        %v946 = vmul.f32 %v910, %v920
        %v947 = vmul.f32 %v911, %v920
        %v948 = vmul.f32 %v912, %v920
        %v949 = vmul.f32 %v913, %v920
        %v950 = vmul.f32 %v914, %v920
        %v951 = vmul.f32 %v915, %v920
        %v952 = vmul.f32 %v916, %v920
        %v953 = vadd.f32 %v853, %v921
        %v954 = vadd.f32 %v854, %v922
        %v955 = vadd.f32 %v855, %v923
        %v956 = vadd.f32 %v856, %v924
        %v957 = vadd.f32 %v857, %v925
        %v958 = vadd.f32 %v858, %v926
        %v959 = vadd.f32 %v859, %v927
        %v960 = vadd.f32 %v860, %v928
        %v961 = vadd.f32 %v861, %v929
        %v962 = vadd.f32 %v862, %v930
        %v963 = vadd.f32 %v863, %v931
        %v964 = vadd.f32 %v864, %v932
        %v965 = vadd.f32 %v865, %v933
        %v966 = vadd.f32 %v866, %v934
        %v967 = vadd.f32 %v867, %v935
        %v968 = vadd.f32 %v868, %v936
        %v969 = vadd.f32 %v869, %v937
        %v970 = vadd.f32 %v870, %v938
        %v971 = vadd.f32 %v871, %v939
        %v972 = vadd.f32 %v872, %v940
        %v973 = vadd.f32 %v873, %v941
        %v974 = vadd.f32 %v874, %v942
        %v975 = vadd.f32 %v875, %v943
        %v976 = vadd.f32 %v876, %v944
        %v977 = vadd.f32 %v877, %v945
        %v978 = vadd.f32 %v878, %v946
        %v979 = vadd.f32 %v879, %v947
        %v980 = vadd.f32 %v880, %v948
        %v981 = vadd.f32 %v881, %v949
        %v982 = vadd.f32 %v882, %v950
        %v983 = vadd.f32 %v883, %v951
        %v984 = vadd.f32 %v884, %v952
        %v985 = vld [vmem:[%s784 + $0x2] sm:$0xff]
        %v986 = vld [vmem:[%s784 + $0xa] sm:$0xff]
        %v987 = vld [vmem:[%s784 + $0x1a] sm:$0xff]
        %v988 = vld [vmem:[%s784 + $0x22] sm:$0xff]
        %v989 = vld [vmem:[%s784 + $0x32] sm:$0xff]
        %v990 = vld [vmem:[%s784 + $0x3a] sm:$0xff]
        %v991 = vld [vmem:[%s784 + $0x4a] sm:$0xff]
        %v992 = vld [vmem:[%s784 + $0x52] sm:$0xff]
        %v993 = vld [vmem:[%s784 + $0x62] sm:$0xff]
        %v994 = vld [vmem:[%s784 + $0x6a] sm:$0xff]
        %v995 = vld [vmem:[%s784 + $0x7a] sm:$0xff]
        %v996 = vld [vmem:[%s784 + $0x82] sm:$0xff]
        %v997 = vld [vmem:[%s784 + $0x92] sm:$0xff]
        %v998 = vld [vmem:[%s784 + $0x9a] sm:$0xff]
        %v999 = vld [vmem:[%s784 + $0xaa] sm:$0xff]
        %v1000 = vld [vmem:[%s784 + $0xb2] sm:$0xff]
        %v1001 = vld [vmem:[%s784 + $0xc2] sm:$0xff]
        %v1002 = vld [vmem:[%s784 + $0xca] sm:$0xff]
        %v1003 = vld [vmem:[%s784 + $0xda] sm:$0xff]
        %v1004 = vld [vmem:[%s784 + $0xe2] sm:$0xff]
        %v1005 = vld [vmem:[%s784 + $0xf2] sm:$0xff]
        %v1006 = vld [vmem:[%s784 + $0xfa] sm:$0xff]
        %v1007 = vld [vmem:[%s784 + $0x10a] sm:$0xff]
        %v1008 = vld [vmem:[%s784 + $0x112] sm:$0xff]
        %v1009 = vld [vmem:[%s784 + $0x122] sm:$0xff]
        %v1010 = vld [vmem:[%s784 + $0x12a] sm:$0xff]
        %v1011 = vld [vmem:[%s784 + $0x13a] sm:$0xff]
        %v1012 = vld [vmem:[%s784 + $0x142] sm:$0xff]
        %v1013 = vld [vmem:[%s784 + $0x152] sm:$0xff]
        %v1014 = vld [vmem:[%s784 + $0x15a] sm:$0xff]
        %v1015 = vld [vmem:[%s784 + $0x16a] sm:$0xff]
        %v1016 = vld [vmem:[%s784 + $0x172] sm:$0xff]
        %v1017 = vlaneseq
        %v1018 = vshrl.u32 %v1017, 7
        %v1019 = vsub.s32 0, %v1018
        %v1020 = vrot.slane %v214, %v1019
        %v1021 = vmul.f32 %v985, %v1020
        %v1022 = vmul.f32 %v986, %v1020
        %v1023 = vmul.f32 %v987, %v1020
        %v1024 = vmul.f32 %v988, %v1020
        %v1025 = vmul.f32 %v989, %v1020
        %v1026 = vmul.f32 %v990, %v1020
        %v1027 = vmul.f32 %v991, %v1020
        %v1028 = vmul.f32 %v992, %v1020
        %v1029 = vmul.f32 %v993, %v1020
        %v1030 = vmul.f32 %v994, %v1020
        %v1031 = vmul.f32 %v995, %v1020
        %v1032 = vmul.f32 %v996, %v1020
        %v1033 = vmul.f32 %v997, %v1020
        %v1034 = vmul.f32 %v998, %v1020
        %v1035 = vmul.f32 %v999, %v1020
        %v1036 = vmul.f32 %v1000, %v1020
        %v1037 = vmul.f32 %v1001, %v1020
        %v1038 = vmul.f32 %v1002, %v1020
        %v1039 = vmul.f32 %v1003, %v1020
        %v1040 = vmul.f32 %v1004, %v1020
        %v1041 = vmul.f32 %v1005, %v1020
        %v1042 = vmul.f32 %v1006, %v1020
        %v1043 = vmul.f32 %v1007, %v1020
        %v1044 = vmul.f32 %v1008, %v1020
        %v1045 = vmul.f32 %v1009, %v1020
        %v1046 = vmul.f32 %v1010, %v1020
        %v1047 = vmul.f32 %v1011, %v1020
        %v1048 = vmul.f32 %v1012, %v1020
        %v1049 = vmul.f32 %v1013, %v1020
        %v1050 = vmul.f32 %v1014, %v1020
        %v1051 = vmul.f32 %v1015, %v1020
        %v1052 = vmul.f32 %v1016, %v1020
        %v1053 = vadd.f32 %v953, %v1021
        %v1054 = vadd.f32 %v954, %v1022
        %v1055 = vadd.f32 %v955, %v1023
        %v1056 = vadd.f32 %v956, %v1024
        %v1057 = vadd.f32 %v957, %v1025
        %v1058 = vadd.f32 %v958, %v1026
        %v1059 = vadd.f32 %v959, %v1027
        %v1060 = vadd.f32 %v960, %v1028
        %v1061 = vadd.f32 %v961, %v1029
        %v1062 = vadd.f32 %v962, %v1030
        %v1063 = vadd.f32 %v963, %v1031
        %v1064 = vadd.f32 %v964, %v1032
        %v1065 = vadd.f32 %v965, %v1033
        %v1066 = vadd.f32 %v966, %v1034
        %v1067 = vadd.f32 %v967, %v1035
        %v1068 = vadd.f32 %v968, %v1036
        %v1069 = vadd.f32 %v969, %v1037
        %v1070 = vadd.f32 %v970, %v1038
        %v1071 = vadd.f32 %v971, %v1039
        %v1072 = vadd.f32 %v972, %v1040
        %v1073 = vadd.f32 %v973, %v1041
        %v1074 = vadd.f32 %v974, %v1042
        %v1075 = vadd.f32 %v975, %v1043
        %v1076 = vadd.f32 %v976, %v1044
        %v1077 = vadd.f32 %v977, %v1045
        %v1078 = vadd.f32 %v978, %v1046
        %v1079 = vadd.f32 %v979, %v1047
        %v1080 = vadd.f32 %v980, %v1048
        %v1081 = vadd.f32 %v981, %v1049
        %v1082 = vadd.f32 %v982, %v1050
        %v1083 = vadd.f32 %v983, %v1051
        %v1084 = vadd.f32 %v984, %v1052
        %v1085 = vpack.c.bf16 %v1054, %v1053
        %v1086 = vpack.c.bf16 %v1056, %v1055
        %v1087 = vpack.c.bf16 %v1058, %v1057
        %v1088 = vpack.c.bf16 %v1060, %v1059
        %v1089 = vpack.c.bf16 %v1062, %v1061
        %v1090 = vpack.c.bf16 %v1064, %v1063
        %v1091 = vpack.c.bf16 %v1066, %v1065
        %v1092 = vpack.c.bf16 %v1068, %v1067
        %v1093 = vpack.c.bf16 %v1070, %v1069
        %v1094 = vpack.c.bf16 %v1072, %v1071
        %v1095 = vpack.c.bf16 %v1074, %v1073
        %v1096 = vpack.c.bf16 %v1076, %v1075
        %v1097 = vpack.c.bf16 %v1078, %v1077
        %v1098 = vpack.c.bf16 %v1080, %v1079
        %v1099 = vpack.c.bf16 %v1082, %v1081
        %v1100 = vpack.c.bf16 %v1084, %v1083
        %1101 = vst [vmem:[#allocation2] sm:$0xff] %v1085
        %1102 = vst [vmem:[#allocation2 + $0x8] sm:$0xff] %v1086
        %1103 = vst [vmem:[#allocation2 + $0x10] sm:$0xff] %v1087
        %1104 = vst [vmem:[#allocation2 + $0x18] sm:$0xff] %v1088
        %1105 = vst [vmem:[#allocation2 + $0x20] sm:$0xff] %v1089
        %1106 = vst [vmem:[#allocation2 + $0x28] sm:$0xff] %v1090
        %1107 = vst [vmem:[#allocation2 + $0x30] sm:$0xff] %v1091
        %1108 = vst [vmem:[#allocation2 + $0x38] sm:$0xff] %v1092
        %1109 = vst [vmem:[#allocation2 + $0x40] sm:$0xff] %v1093
        %1110 = vst [vmem:[#allocation2 + $0x48] sm:$0xff] %v1094
        %1111 = vst [vmem:[#allocation2 + $0x50] sm:$0xff] %v1095
        %1112 = vst [vmem:[#allocation2 + $0x58] sm:$0xff] %v1096
        %1113 = vst [vmem:[#allocation2 + $0x60] sm:$0xff] %v1097
        %1114 = vst [vmem:[#allocation2 + $0x68] sm:$0xff] %v1098
        %1115 = vst [vmem:[#allocation2 + $0x70] sm:$0xff] %v1099
        %1116 = vst [vmem:[#allocation2 + $0x78] sm:$0xff] %v1100
      $region36: #{_separable_conv2d_impl.1} parent=31 // pred_fallthru
        _
      %v1117 = vld [vmem:[#allocation2] sm:$0xff]
      %v1118 = vld [vmem:[#allocation2 + $0x8] sm:$0xff]
      %v1119 = vld [vmem:[#allocation2 + $0x10] sm:$0xff]
      %v1120 = vld [vmem:[#allocation2 + $0x18] sm:$0xff]
      %v1121 = vld [vmem:[#allocation2 + $0x20] sm:$0xff]
      %v1122 = vld [vmem:[#allocation2 + $0x28] sm:$0xff]
      %v1123 = vld [vmem:[#allocation2 + $0x30] sm:$0xff]
      %v1124 = vld [vmem:[#allocation2 + $0x38] sm:$0xff]
      %v1125 = vld [vmem:[#allocation2 + $0x40] sm:$0xff]
      %v1126 = vld [vmem:[#allocation2 + $0x48] sm:$0xff]
      %v1127 = vld [vmem:[#allocation2 + $0x50] sm:$0xff]
      %v1128 = vld [vmem:[#allocation2 + $0x58] sm:$0xff]
      %v1129 = vld [vmem:[#allocation2 + $0x60] sm:$0xff]
      %v1130 = vld [vmem:[#allocation2 + $0x68] sm:$0xff]
      %v1131 = vld [vmem:[#allocation2 + $0x70] sm:$0xff]
      %v1132 = vld [vmem:[#allocation2 + $0x78] sm:$0xff]
      %v1133 = vld [vmem:[%s199] sm:$0xf]
      %v1134 = vld [vmem:[%s199 + $0x4] sm:$0xf]
      %v1135 = vld [vmem:[%s199 + $0x8] sm:$0xf]
      %v1136 = vld [vmem:[%s199 + $0xc] sm:$0xf]
      %v1137 = vld [vmem:[%s199 + $0x10] sm:$0xf]
      %v1138 = vld [vmem:[%s199 + $0x14] sm:$0xf]
      %v1139 = vld [vmem:[%s199 + $0x18] sm:$0xf]
      %v1140 = vld [vmem:[%s199 + $0x1c] sm:$0xf]
      %v1141 = vld [vmem:[%s199 + $0x20] sm:$0xf]
      %v1142 = vld [vmem:[%s199 + $0x24] sm:$0xf]
      %v1143 = vld [vmem:[%s199 + $0x28] sm:$0xf]
      %v1144 = vld [vmem:[%s199 + $0x2c] sm:$0xf]
      %v1145 = vld [vmem:[%s199 + $0x30] sm:$0xf]
      %v1146 = vld [vmem:[%s199 + $0x34] sm:$0xf]
      %v1147 = vld [vmem:[%s199 + $0x38] sm:$0xf]
      %v1148 = vld [vmem:[%s199 + $0x3c] sm:$0xf]
      %v1165 = vunpack.c.l.b16 %v1133
      %v1166 = vunpack.c.l.b16 %v1134
      %v1167 = vunpack.c.l.b16 %v1135
      %v1168 = vunpack.c.l.b16 %v1136
      %v1169 = vunpack.c.l.b16 %v1137
      %v1170 = vunpack.c.l.b16 %v1138
      %v1171 = vunpack.c.l.b16 %v1139
      %v1172 = vunpack.c.l.b16 %v1140
      %v1173 = vunpack.c.l.b16 %v1141
      %v1174 = vunpack.c.l.b16 %v1142
      %v1175 = vunpack.c.l.b16 %v1143
      %v1176 = vunpack.c.l.b16 %v1144
      %v1177 = vunpack.c.l.b16 %v1145
      %v1178 = vunpack.c.l.b16 %v1146
      %v1179 = vunpack.c.l.b16 %v1147
      %v1180 = vunpack.c.l.b16 %v1148
      %v1181 = vpack.c.b16 %v1166, %v1165
      %v1182 = vpack.c.b16 %v1168, %v1167
      %v1183 = vpack.c.b16 %v1170, %v1169
      %v1184 = vpack.c.b16 %v1172, %v1171
      %v1185 = vpack.c.b16 %v1174, %v1173
      %v1186 = vpack.c.b16 %v1176, %v1175
      %v1187 = vpack.c.b16 %v1178, %v1177
      %v1188 = vpack.c.b16 %v1180, %v1179
      %1197 = vmatprep.subr.bf16.mxu0 0
      %1198 = vmatpush1.bf16.msra.mxu0 %v1181
      %1199 = vmatprep.subr.bf16.mxu0 0
      %1200 = vmatpush1.bf16.msra.mxu0 %v1182
      %1201 = vmatprep.subr.bf16.mxu0 0
      %1202 = vmatpush1.bf16.msra.mxu0 %v1183
      %1203 = vmatprep.subr.bf16.mxu0 0
      %1204 = vmatpush1.bf16.msra.mxu0 %v1184
      %1205 = vmatprep.subr.bf16.mxu0 0
      %1206 = vmatpush1.bf16.msra.mxu0 %v1185
      %1207 = vmatprep.subr.bf16.mxu0 0
      %1208 = vmatpush1.bf16.msra.mxu0 %v1186
      %1209 = vmatprep.subr.bf16.mxu0 0
      %1210 = vmatpush1.bf16.msra.mxu0 %v1187
      %1211 = vmatprep.subr.bf16.mxu0 0
      %1212 = vmatpush1.bf16.msra.mxu0 %v1188
      %1213 = vmatprep.subr.bf16.mxu0 0
      %1214 = vmatpush1.bf16.msra.mxu0 0
      %1215 = vmatprep.subr.bf16.mxu0 0
      %1216 = vmatpush1.bf16.msra.mxu0 0
      %1217 = vmatprep.subr.bf16.mxu0 0
      %1218 = vmatpush1.bf16.msra.mxu0 0
      %1219 = vmatprep.subr.bf16.mxu0 0
      %1220 = vmatpush1.bf16.msra.mxu0 0
      %1221 = vmatprep.subr.bf16.mxu0 0
      %1222 = vmatpush1.bf16.msra.mxu0 0
      %1223 = vmatprep.subr.bf16.mxu0 0
      %1224 = vmatpush1.bf16.msra.mxu0 0
      %1225 = vmatprep.subr.bf16.mxu0 0
      %1226 = vmatpush1.bf16.msra.mxu0 0
      %1227 = vmatprep.subr.bf16.mxu0 0
      %1228 = vmatpush1.bf16.msra.mxu0 0
      %1229 = vmatprep.mubr.bf16.mxu0 0
      %1230 = vmatmul.mubr.bf16.gmra.mrb[0].mxu0 %v1117
      %v1231 = vpop.f32.mrb[0].mxu0
      %v1232 = vadd.f32 0.0, %v1231
      %v1233 = vpop.f32.mrb[0].mxu0
      %v1234 = vpop.f32.mrb[0].mxu0
      %v1235 = vadd.f32 0.0, %v1234
      %v1236 = vpop.f32.mrb[0].mxu0
      %1237 = vmatprep.mubr.bf16.mxu0 0
      %1238 = vmatmul.mubr.bf16.gmra.mrb[0].mxu0 %v1118
      %v1239 = vpop.f32.mrb[0].mxu0
      %v1240 = vadd.f32 0.0, %v1239
      %v1241 = vpop.f32.mrb[0].mxu0
      %v1242 = vpop.f32.mrb[0].mxu0
      %v1243 = vadd.f32 0.0, %v1242
      %v1244 = vpop.f32.mrb[0].mxu0
      %1245 = vmatprep.mubr.bf16.mxu0 0
      %1246 = vmatmul.mubr.bf16.gmra.mrb[0].mxu0 %v1119
      %v1247 = vpop.f32.mrb[0].mxu0
      %v1248 = vadd.f32 0.0, %v1247
      %v1249 = vpop.f32.mrb[0].mxu0
      %v1250 = vpop.f32.mrb[0].mxu0
      %v1251 = vadd.f32 0.0, %v1250
      %v1252 = vpop.f32.mrb[0].mxu0
      %1253 = vmatprep.mubr.bf16.mxu0 0
      %1254 = vmatmul.mubr.bf16.gmra.mrb[0].mxu0 %v1120
      %v1255 = vpop.f32.mrb[0].mxu0
      %v1256 = vadd.f32 0.0, %v1255
      %v1257 = vpop.f32.mrb[0].mxu0
      %v1258 = vpop.f32.mrb[0].mxu0
      %v1259 = vadd.f32 0.0, %v1258
      %v1260 = vpop.f32.mrb[0].mxu0
      %1261 = vmatprep.mubr.bf16.mxu0 0
      %1262 = vmatmul.mubr.bf16.gmra.mrb[0].mxu0 %v1121
      %v1263 = vpop.f32.mrb[0].mxu0
      %v1264 = vadd.f32 0.0, %v1263
      %v1265 = vpop.f32.mrb[0].mxu0
      %v1266 = vpop.f32.mrb[0].mxu0
      %v1267 = vadd.f32 0.0, %v1266
      %v1268 = vpop.f32.mrb[0].mxu0
      %1269 = vmatprep.mubr.bf16.mxu0 0
      %1270 = vmatmul.mubr.bf16.gmra.mrb[0].mxu0 %v1122
      %v1271 = vpop.f32.mrb[0].mxu0
      %v1272 = vadd.f32 0.0, %v1271
      %v1273 = vpop.f32.mrb[0].mxu0
      %v1274 = vpop.f32.mrb[0].mxu0
      %v1275 = vadd.f32 0.0, %v1274
      %v1276 = vpop.f32.mrb[0].mxu0
      %1277 = vmatprep.mubr.bf16.mxu0 0
      %1278 = vmatmul.mubr.bf16.gmra.mrb[0].mxu0 %v1123
      %v1279 = vpop.f32.mrb[0].mxu0
      %v1280 = vadd.f32 0.0, %v1279
      %v1281 = vpop.f32.mrb[0].mxu0
      %v1282 = vpop.f32.mrb[0].mxu0
      %v1283 = vadd.f32 0.0, %v1282
      %v1284 = vpop.f32.mrb[0].mxu0
      %1285 = vmatprep.mubr.bf16.mxu0 0
      %1286 = vmatmul.mubr.bf16.gmra.mrb[0].mxu0 %v1124
      %v1287 = vpop.f32.mrb[0].mxu0
      %v1288 = vadd.f32 0.0, %v1287
      %v1289 = vpop.f32.mrb[0].mxu0
      %v1290 = vpop.f32.mrb[0].mxu0
      %v1291 = vadd.f32 0.0, %v1290
      %v1292 = vpop.f32.mrb[0].mxu0
      %1293 = vmatprep.mubr.bf16.mxu0 0
      %1294 = vmatmul.mubr.bf16.gmra.mrb[0].mxu0 %v1125
      %v1295 = vpop.f32.mrb[0].mxu0
      %v1296 = vadd.f32 0.0, %v1295
      %v1297 = vpop.f32.mrb[0].mxu0
      %v1298 = vpop.f32.mrb[0].mxu0
      %v1299 = vadd.f32 0.0, %v1298
      %v1300 = vpop.f32.mrb[0].mxu0
      %1301 = vmatprep.mubr.bf16.mxu0 0
      %1302 = vmatmul.mubr.bf16.gmra.mrb[0].mxu0 %v1126
      %v1303 = vpop.f32.mrb[0].mxu0
      %v1304 = vadd.f32 0.0, %v1303
      %v1305 = vpop.f32.mrb[0].mxu0
      %v1306 = vpop.f32.mrb[0].mxu0
      %v1307 = vadd.f32 0.0, %v1306
      %v1308 = vpop.f32.mrb[0].mxu0
      %1309 = vmatprep.mubr.bf16.mxu0 0
      %1310 = vmatmul.mubr.bf16.gmra.mrb[0].mxu0 %v1127
      %v1311 = vpop.f32.mrb[0].mxu0
      %v1312 = vadd.f32 0.0, %v1311
      %v1313 = vpop.f32.mrb[0].mxu0
      %v1314 = vpop.f32.mrb[0].mxu0
      %v1315 = vadd.f32 0.0, %v1314
      %v1316 = vpop.f32.mrb[0].mxu0
      %1317 = vmatprep.mubr.bf16.mxu0 0
      %1318 = vmatmul.mubr.bf16.gmra.mrb[0].mxu0 %v1128
      %v1319 = vpop.f32.mrb[0].mxu0
      %v1320 = vadd.f32 0.0, %v1319
      %v1321 = vpop.f32.mrb[0].mxu0
      %v1322 = vpop.f32.mrb[0].mxu0
      %v1323 = vadd.f32 0.0, %v1322
      %v1324 = vpop.f32.mrb[0].mxu0
      %1325 = vmatprep.mubr.bf16.mxu0 0
      %1326 = vmatmul.mubr.bf16.gmra.mrb[0].mxu0 %v1129
      %v1327 = vpop.f32.mrb[0].mxu0
      %v1328 = vadd.f32 0.0, %v1327
      %v1329 = vpop.f32.mrb[0].mxu0
      %v1330 = vpop.f32.mrb[0].mxu0
      %v1331 = vadd.f32 0.0, %v1330
      %v1332 = vpop.f32.mrb[0].mxu0
      %1333 = vmatprep.mubr.bf16.mxu0 0
      %1334 = vmatmul.mubr.bf16.gmra.mrb[0].mxu0 %v1130
      %v1335 = vpop.f32.mrb[0].mxu0
      %v1336 = vadd.f32 0.0, %v1335
      %v1337 = vpop.f32.mrb[0].mxu0
      %v1338 = vpop.f32.mrb[0].mxu0
      %v1339 = vadd.f32 0.0, %v1338
      %v1340 = vpop.f32.mrb[0].mxu0
      %1341 = vmatprep.mubr.bf16.mxu0 0
      %1342 = vmatmul.mubr.bf16.gmra.mrb[0].mxu0 %v1131
      %v1343 = vpop.f32.mrb[0].mxu0
      %v1344 = vadd.f32 0.0, %v1343
      %v1345 = vpop.f32.mrb[0].mxu0
      %v1346 = vpop.f32.mrb[0].mxu0
      %v1347 = vadd.f32 0.0, %v1346
      %v1348 = vpop.f32.mrb[0].mxu0
      %1349 = vmatprep.mubr.bf16.mxu0 0
      %1350 = vmatmul.mubr.bf16.gmra.mrb[0].mxu0 %v1132
      %v1351 = vpop.f32.mrb[0].mxu0
      %v1352 = vadd.f32 0.0, %v1351
      %v1353 = vpop.f32.mrb[0].mxu0
      %v1354 = vpop.f32.mrb[0].mxu0
      %v1355 = vadd.f32 0.0, %v1354
      %v1356 = vpop.f32.mrb[0].mxu0
      %1357 = vdwg.mxu0
      %1358 = vst [vmem:[%s207] sm:$0xff] %v1232
      %1359 = vst [vmem:[%s207 + $0x8] sm:$0xff] %v1235
      %1360 = vst [vmem:[%s207 + $0x10] sm:$0xff] %v1240
      %1361 = vst [vmem:[%s207 + $0x18] sm:$0xff] %v1243
      %1362 = vst [vmem:[%s207 + $0x20] sm:$0xff] %v1248
      %1363 = vst [vmem:[%s207 + $0x28] sm:$0xff] %v1251
      %1364 = vst [vmem:[%s207 + $0x30] sm:$0xff] %v1256
      %1365 = vst [vmem:[%s207 + $0x38] sm:$0xff] %v1259
      %1366 = vst [vmem:[%s207 + $0x40] sm:$0xff] %v1264
      %1367 = vst [vmem:[%s207 + $0x48] sm:$0xff] %v1267
      %1368 = vst [vmem:[%s207 + $0x50] sm:$0xff] %v1272
      %1369 = vst [vmem:[%s207 + $0x58] sm:$0xff] %v1275
      %1370 = vst [vmem:[%s207 + $0x60] sm:$0xff] %v1280
      %1371 = vst [vmem:[%s207 + $0x68] sm:$0xff] %v1283
      %1372 = vst [vmem:[%s207 + $0x70] sm:$0xff] %v1288
      %1373 = vst [vmem:[%s207 + $0x78] sm:$0xff] %v1291
      %1374 = vst [vmem:[%s207 + $0x80] sm:$0xff] %v1296
      %1375 = vst [vmem:[%s207 + $0x88] sm:$0xff] %v1299
      %1376 = vst [vmem:[%s207 + $0x90] sm:$0xff] %v1304
      %1377 = vst [vmem:[%s207 + $0x98] sm:$0xff] %v1307
      %1378 = vst [vmem:[%s207 + $0xa0] sm:$0xff] %v1312
      %1379 = vst [vmem:[%s207 + $0xa8] sm:$0xff] %v1315
      %1380 = vst [vmem:[%s207 + $0xb0] sm:$0xff] %v1320
      %1381 = vst [vmem:[%s207 + $0xb8] sm:$0xff] %v1323
      %1382 = vst [vmem:[%s207 + $0xc0] sm:$0xff] %v1328
      %1383 = vst [vmem:[%s207 + $0xc8] sm:$0xff] %v1331
      %1384 = vst [vmem:[%s207 + $0xd0] sm:$0xff] %v1336
      %1385 = vst [vmem:[%s207 + $0xd8] sm:$0xff] %v1339
      %1386 = vst [vmem:[%s207 + $0xe0] sm:$0xff] %v1344
      %1387 = vst [vmem:[%s207 + $0xe8] sm:$0xff] %v1347
      %1388 = vst [vmem:[%s207 + $0xf0] sm:$0xff] %v1352
      %1389 = vst [vmem:[%s207 + $0xf8] sm:$0xff] %v1355
      %p1390 = scmp.lt.s32.totalorder %s18, 1
      %s1391 = scalar_select %p1390, %s18, 1
      %p1392 = scmp.lt.s32.totalorder %s19, 0
      %s1393 = scalar_select %p1392, %s19, 0
      %s1394 = smul.addr %s1391, 32
      %s1395 = sadd.s32 %s1393, %s1394
      %s1396 = smul.addr %s1395, 8
      %s1397 = scalar_lea.vmem %s3, %s1396
      // Predicated region
      $region37: #{_separable_conv2d_impl.1} parent=31 // pred_check
        %p1398 = pneg %p119
      $region38: #{_separable_conv2d_impl.1} parent=31 // pred_check_branch
        %1400 = sbr.rel (%p1398) target = $region40
      $region39: #{_separable_conv2d_impl.1} parent=31 // pred_region
        _
      $region40: #{_separable_conv2d_impl.1} parent=31 // pred_fallthru
        _
    $region32: #{_separable_conv2d_impl.1} parent=5 // pred_fallthru
      _
    %p1401 = scmp.le.s32.totalorder 2, %s9
    // Predicated region
    $region41: #{_separable_conv2d_impl.1} parent=5 // pred_check
      %p1402 = pneg %p1401
    $region42: #{_separable_conv2d_impl.1} parent=5 // pred_check_branch
      %1404 = sbr.rel (%p1402) target = $region44
    $region43: #{_separable_conv2d_impl.1} parent=5 // pred_region
      %s1405 = ssub.s32 %s9, 2
      // Predicated region
      $region45: #{_separable_conv2d_impl.1} parent=43 // pred_check
        %p1406 = pneg %p125
      $region46: #{_separable_conv2d_impl.1} parent=43 // pred_check_branch
        %1408 = sbr.rel (%p1406) target = $region48
      $region47: #{_separable_conv2d_impl.1} parent=43 // pred_region
        %p1409 = scmp.lt.s32.totalorder %s20, 1
        %s1410 = scalar_select %p1409, %s20, 1
        %p1411 = scmp.lt.s32.totalorder %s21, 0
        %s1412 = scalar_select %p1411, %s21, 0
        %s1413 = smul.addr %s1410, 32
        %s1414 = sadd.s32 %s1412, %s1413
        %s1415 = smul.addr %s1414, 8
        %s1416 = scalar_lea.vmem %s3, %s1415
      $region48: #{_separable_conv2d_impl.1} parent=43 // pred_fallthru
        _
    $region44: #{_separable_conv2d_impl.1} parent=5 // pred_fallthru
      _
  $region6: #{_separable_conv2d_impl.1} parent=0 // loop_footer
    %s13 = sadd.s32 1, %s9
  $region7: #{_separable_conv2d_impl.1} parent=0 // loop_footer_branch
    %8 = sbr.rel target = $region3
  $region8: #{_separable_conv2d_impl.1} parent=0 // loop_exit
    _

</llo_original>
